<compile_context>
chip_gen: v7x
topology: tpu7x:2x2x1
jax: 0.10.0
libtpu: 0.0.40
codegen_flags: <defaults>
</compile_context>

<pallas_src>
import functools

import jax
import jax.numpy as jnp
from jax.experimental import pallas as pl
from jax.experimental.pallas import tpu as pltpu

BN_EPS = 1e-5
_LANE = 128


def _silu(x):
    return x * (1.0 / (1.0 + jnp.exp(-x)))


def _stage_kernel(*refs, op, apply_prev, emit_prev, stride, has_halo):
    """One ConvBlock stage on a (C, L_TILE) tile (C on sublanes, L on lanes).

        t = SiLU(a * x + b)    # folded BN+SiLU of the previous stage (skipped on stage 1)
        z = conv(t)            # 'pw': 1x1 channel mix on the MXU, 'dw': depthwise k=3 p=1
        outputs: [x_out = t (optional)], z, per-(sample, tile) channel [sum z, sum z^2]

    For stride > 1 the kernel writes full-resolution z (the wrapper keeps every
    stride-th column); the BN statistics are masked to describe the *strided* output.
    """
    i = 0
    x_ref = refs[i]; i += 1
    if has_halo:
        xl_ref, xr_ref = refs[i], refs[i + 1]; i += 2
    a_ref, b_ref, w_ref = refs[i], refs[i + 1], refs[i + 2]; i += 3
    if emit_prev:
        xout_ref = refs[i]; i += 1
    z_ref, stats_ref = refs[i], refs[i + 1]

    a = a_ref[...]                                          # (C, 1) f32
    b = b_ref[...]

    def fold(v):
        v = v.astype(jnp.float32)
        return _silu(v * a + b) if apply_prev else v

    t = fold(x_ref[...])                                    # (C, LT) f32
    C, LT = t.shape

    if emit_prev:
        xout_ref[...] = t.astype(xout_ref.dtype)

    if op == "pw":
        # kernel_size=1 conv == channel-mixing matmul (C_out, C_in) @ (C_in, LT) on the
        # MXU; operand dtype (bf16 vs f32) is inherited from the weight passed in.
        z = jnp.dot(w_ref[...], t.astype(w_ref.dtype),
                    preferred_element_type=jnp.float32)
    else:
        # depthwise conv, k=3, padding=1: +-1 taps are in-register lane shifts; the tile
        # edges come from the 128-lane halo blocks of the neighbouring tiles (or zero
        # padding at the sequence ends).
        if has_halo:
            l = pl.program_id(1)
            nl = pl.num_programs(1)
            lcol = fold(xl_ref[...][:, -1:]) * (l > 0).astype(jnp.float32)
            rcol = fold(xr_ref[...][:, :1]) * (l < nl - 1).astype(jnp.float32)
        else:
            lcol = jnp.zeros((C, 1), jnp.float32)
            rcol = jnp.zeros((C, 1), jnp.float32)
        t_m1 = jnp.concatenate([lcol, t[:, :LT - 1]], axis=1)   # t[l-1]
        t_p1 = jnp.concatenate([t[:, 1:], rcol], axis=1)        # t[l+1]
        w = w_ref[...].astype(jnp.float32)                      # (C, 3)
        z = w[:, 0:1] * t_m1 + w[:, 1:2] * t + w[:, 2:3] * t_p1

    z_ref[...] = z.astype(z_ref.dtype)

    if stride > 1:
        # Stats of the *downsampled* output: mask to the kept columns (LT % stride == 0
        # is guaranteed by the tile picker, so local lane index == global phase).
        lane = jax.lax.broadcasted_iota(jnp.int32, (C, LT), 1)
        keep = (lane % stride) == 0
        zk = jnp.where(keep, z, 0.0)
        s1 = jnp.sum(zk, axis=-1, keepdims=True)
        s2 = jnp.sum(zk * z, axis=-1, keepdims=True)
    else:
        s1 = jnp.sum(z, axis=-1, keepdims=True)
        s2 = jnp.sum(z * z, axis=-1, keepdims=True)
    stats_ref[...] = jnp.concatenate([s1, s2], axis=-1)     # (C, 2) f32


def _apply_kernel(z_ref, a_ref, b_ref, o_ref):
    """Final folded BN+SiLU apply (per-channel scale/shift)."""
    t = z_ref[...].astype(jnp.float32) * a_ref[...] + b_ref[...]
    o_ref[...] = _silu(t).astype(o_ref.dtype)


def _pick_l_tile(lin, c, in_bytes, stride, l_tile_max):
    """Largest lane tile that divides L, is a multiple of 128 (and of stride), gives
    >= 2 tiles, and keeps one (C, LT) input buffer around ~2 MiB (double-buffered)."""
    l_tile_max = max(int(l_tile_max), _LANE)
    if lin % _LANE or lin <= _LANE:
        return None
    budget = max(_LANE, (2 * 1024 * 1024) // max(1, c * in_bytes))
    cap = min(l_tile_max, budget, lin // 2)
    cap = (cap // _LANE) * _LANE
    best = None
    lt = _LANE
    while lt <= cap:
        if lin % lt == 0 and lt % stride == 0:
            best = lt
        lt += _LANE
    return best


_COMPILER_PARAMS = pltpu.CompilerParams(
    dimension_semantics=("parallel", "parallel"),
    vmem_limit_bytes=32 * 1024 * 1024,
)


def _run_stage(x, a, b, w, *, op, apply_prev, emit_prev=False, stride=1,
               out_dtype=jnp.float32, l_tile_max=2048):
    N, C, Lin = x.shape
    lt = _pick_l_tile(Lin, C, x.dtype.itemsize, stride, l_tile_max)
    tiled = lt is not None
    LT = lt if tiled else Lin
    NLT = (Lin // LT) if tiled else 1
    has_halo = tiled and (op == "dw")

    in_specs = [pl.BlockSpec((None, C, LT), lambda n, l: (n, 0, l))]
    operands = [x]
    if has_halo:
        bpt = LT // _LANE                      # 128-lane blocks per tile
        nb = Lin // _LANE                      # total 128-lane blocks in L
        in_specs += [
            pl.BlockSpec((None, C, _LANE),
                         lambda n, l: (n, 0, jnp.maximum(l * bpt - 1, 0))),
            pl.BlockSpec((None, C, _LANE),
                         lambda n, l: (n, 0, jnp.minimum((l + 1) * bpt, nb - 1))),
        ]
        operands += [x, x]
    in_specs += [
        pl.BlockSpec((C, 1), lambda n, l: (0, 0)),
        pl.BlockSpec((C, 1), lambda n, l: (0, 0)),
        pl.BlockSpec(w.shape, lambda n, l: (0, 0)),
    ]
    operands += [a, b, w]

    out_shape, out_specs = [], []
    if emit_prev:
        out_shape.append(jax.ShapeDtypeStruct((N, C, Lin), out_dtype))
        out_specs.append(pl.BlockSpec((None, C, LT), lambda n, l: (n, 0, l)))
    out_shape.append(jax.ShapeDtypeStruct((N, C, Lin), out_dtype))       # z (full width)
    out_specs.append(pl.BlockSpec((None, C, LT), lambda n, l: (n, 0, l)))
    out_shape.append(jax.ShapeDtypeStruct((N, NLT, C, 2), jnp.float32))  # BN stats
    out_specs.append(pl.BlockSpec((None, None, C, 2), lambda n, l: (n, l, 0, 0)))

    kernel = functools.partial(_stage_kernel, op=op, apply_prev=apply_prev,
                               emit_prev=emit_prev, stride=stride, has_halo=has_halo)
    return pl.pallas_call(
        kernel,
        out_shape=tuple(out_shape),
        grid=(N, NLT),
        in_specs=in_specs,
        out_specs=tuple(out_specs),
        compiler_params=_COMPILER_PARAMS,
    )(*operands)


def _run_apply(z, a, b, *, out_dtype, l_tile_max=2048):
    N, C, L = z.shape
    lt = _pick_l_tile(L, C, z.dtype.itemsize, 1, l_tile_max)
    LT = lt if lt is not None else L
    NLT = (L // LT) if lt is not None else 1
    return pl.pallas_call(
        _apply_kernel,
        out_shape=jax.ShapeDtypeStruct((N, C, L), out_dtype),
        grid=(N, NLT),
        in_specs=[
            pl.BlockSpec((None, C, LT), lambda n, l: (n, 0, l)),
            pl.BlockSpec((C, 1), lambda n, l: (0, 0)),
            pl.BlockSpec((C, 1), lambda n, l: (0, 0)),
        ],
        out_specs=pl.BlockSpec((None, C, LT), lambda n, l: (n, 0, l)),
        compiler_params=_COMPILER_PARAMS,
    )(z, a, b)


def _bn_affine(stats, gamma, beta, count):
    """Fold train-mode BatchNorm1d (batch stats, biased var) into y*a + b per channel."""
    tot = jnp.sum(stats, axis=(0, 1))                       # (C, 2)
    mean = tot[:, 0] / count
    var = jnp.maximum(tot[:, 1] / count - mean * mean, 0.0)
    a = gamma * jax.lax.rsqrt(var + BN_EPS)
    b = beta - mean * a
    return a.reshape(-1, 1), b.reshape(-1, 1)


def convblock_forward(x, params, stride=1, act_dtype=jnp.bfloat16, l_tile_max=2048):
    """x: (N, C, L) float32 in NCL.  Returns (x_out, out) exactly as ConvBlock.forward."""
    N, C, L = x.shape
    (W1, g1, be1, w2, g2, be2, w3, g3, be3, w4, g4, be4, W5, g5, be5) = params

    mxu_dtype = jnp.bfloat16 if act_dtype == jnp.bfloat16 else jnp.float32
    W1 = W1.astype(mxu_dtype)
    W5 = W5.astype(mxu_dtype)

    ones = jnp.ones((C, 1), jnp.float32)
    zeros = jnp.zeros((C, 1), jnp.float32)
    run = functools.partial(_run_stage, out_dtype=act_dtype, l_tile_max=l_tile_max)

    # conv1x1_1: 1x1 -> BN -> SiLU -> dw3 -> BN -> SiLU -> dw3 -> BN -> SiLU
    z1, s1 = run(x, ones, zeros, W1, op="pw", apply_prev=False)
    a1, b1 = _bn_affine(s1, g1, be1, N * L)
    z2, s2 = run(z1, a1, b1, w2, op="dw", apply_prev=True)
    a2, b2 = _bn_affine(s2, g2, be2, N * L)
    z3, s3 = run(z2, a2, b2, w3, op="dw", apply_prev=True)
    a3, b3 = _bn_affine(s3, g3, be3, N * L)

    # conv1 (strided depthwise).  Also materializes x_out = SiLU(BN3(z3)).
    x_out, z4, s4 = run(z3, a3, b3, w4, op="dw", apply_prev=True,
                        emit_prev=True, stride=stride)
    if stride > 1:
        # TODO(synk): keep the downsample inside the kernel once Mosaic strided
        # value-slices are validated; for now XLA strips the discarded lanes.
        z4 = z4[:, :, ::stride]
    L4 = z4.shape[-1]
    a4, b4 = _bn_affine(s4, g4, be4, N * L4)

    # conv1x1_2
    z5, s5 = run(z4, a4, b4, W5, op="pw", apply_prev=True)
    a5, b5 = _bn_affine(s5, g5, be5, N * L4)
    out = _run_apply(z5, a5, b5, out_dtype=act_dtype, l_tile_max=l_tile_max)
    return x_out, out


# ---------------- pure-JAX reference mirroring the PyTorch module (train-mode BN) ------


def _bn_train_ref(y, gamma, beta):
    mean = jnp.mean(y, axis=(0, 2), keepdims=True)
    var = jnp.mean((y - mean) ** 2, axis=(0, 2), keepdims=True)
    return ((y - mean) * jax.lax.rsqrt(var + BN_EPS) * gamma[None, :, None]
            + beta[None, :, None])


def _pw_ref(x, W):
    return jnp.einsum("oi,nil->nol", W, x)


def _dw_ref(x, w, stride=1):
    N, C, L = x.shape
    xp = jnp.pad(x, ((0, 0), (0, 0), (1, 1)))
    y = (w[:, 0][None, :, None] * xp[:, :, 0:L]
         + w[:, 1][None, :, None] * xp[:, :, 1:L + 1]
         + w[:, 2][None, :, None] * xp[:, :, 2:L + 2])
    return y[:, :, ::stride] if stride > 1 else y


def convblock_reference(x, params, stride=1):
    (W1, g1, be1, w2, g2, be2, w3, g3, be3, w4, g4, be4, W5, g5, be5) = params
    silu = lambda v: v * jax.nn.sigmoid(v)
    t = silu(_bn_train_ref(_pw_ref(x, W1), g1, be1))
    t = silu(_bn_train_ref(_dw_ref(t, w2), g2, be2))
    x_out = silu(_bn_train_ref(_dw_ref(t, w3), g3, be3))
    t = silu(_bn_train_ref(_dw_ref(x_out, w4, stride), g4, be4))
    out = silu(_bn_train_ref(_pw_ref(t, W5), g5, be5))
    return x_out, out


def make_params(key, C):
    ks = jax.random.split(key, 15)
    # nn.Conv1d weights: 1x1 convs are (C, C, 1) -> squeezed to (C, C); depthwise k=3
    # convs are (C, 1, 3) -> squeezed to (C, 3).
    W1 = 0.5 * jax.random.normal(ks[0], (C, C), jnp.float32)
    w2 = 0.5 * jax.random.normal(ks[1], (C, 3), jnp.float32)
    w3 = 0.5 * jax.random.normal(ks[2], (C, 3), jnp.float32)
    w4 = 0.5 * jax.random.normal(ks[3], (C, 3), jnp.float32)
    W5 = 0.5 * jax.random.normal(ks[4], (C, C), jnp.float32)

    def bn(kg, kb):
        return (1.0 + 0.1 * jax.random.normal(kg, (C,), jnp.float32),
                0.1 * jax.random.normal(kb, (C,), jnp.float32))

    g1, be1 = bn(ks[5], ks[6])
    g2, be2 = bn(ks[7], ks[8])
    g3, be3 = bn(ks[9], ks[10])
    g4, be4 = bn(ks[11], ks[12])
    g5, be5 = bn(ks[13], ks[14])
    return (W1, g1, be1, w2, g2, be2, w3, g3, be3, w4, g4, be4, W5, g5, be5)


if __name__ == "__main__":
    key = jax.random.PRNGKey(0)
    k_small, k_big, kp_small, kp_big = jax.random.split(key, 4)

    fwd = jax.jit(convblock_forward,
                  static_argnames=("stride", "act_dtype", "l_tile_max"))

    # --- test 1: tiny shapes, untiled path, f32, stride=1 (tight check) ----------------
    N, C, L = 2, 4, 16
    x = jax.random.normal(k_small, (N, C, L), jnp.float32)
    params = make_params(kp_small, C)
    x_out, out = fwd(x, params, stride=1, act_dtype=jnp.float32)
    jax.block_until_ready((x_out, out))
    x_out_ref, out_ref = convblock_reference(x, params, stride=1)
    assert x_out.shape == (N, C, L) and out.shape == (N, C, L)
    assert jnp.allclose(x_out, x_out_ref, atol=2e-4, rtol=2e-4), "small x_out mismatch"
    assert jnp.allclose(out, out_ref, atol=2e-4, rtol=2e-4), "small out mismatch"

    # --- test 2: L-tiled + halo + stride=2 path, f32 ------------------------------------
    N2, C2, L2, S2 = 2, 8, 1024, 2
    x2 = jax.random.normal(k_big, (N2, C2, L2), jnp.float32)
    params2 = make_params(kp_big, C2)
    x_out2, out2 = fwd(x2, params2, stride=S2, act_dtype=jnp.float32, l_tile_max=256)
    jax.block_until_ready((x_out2, out2))
    x_out2_ref, out2_ref = convblock_reference(x2, params2, stride=S2)
    assert x_out2.shape == (N2, C2, L2) and out2.shape == (N2, C2, L2 // S2)
    assert jnp.allclose(x_out2, x_out2_ref, atol=5e-3, rtol=5e-3), "tiled x_out mismatch"
    assert jnp.allclose(out2, out2_ref, atol=5e-3, rtol=5e-3), "tiled out mismatch"

    # --- test 3: same config with bf16 inter-stage activations + bf16 MXU operands -----
    x_out3, out3 = fwd(x2, params2, stride=S2, act_dtype=jnp.bfloat16, l_tile_max=256)
    jax.block_until_ready((x_out3, out3))

    def _rel(a, b):
        a = jnp.asarray(a, jnp.float32)
        b = jnp.asarray(b, jnp.float32)
        return float(jnp.linalg.norm(a - b) / (jnp.linalg.norm(b) + 1e-6))

    assert _rel(x_out3, x_out2_ref) < 5e-2, "bf16 x_out drift too large"
    assert _rel(out3, out2_ref) < 5e-2, "bf16 out drift too large"

    print("KERNEL_OK")
</pallas_src>

<mosaic_0001>
module attributes {stable_mosaic.version = 11 : i64} {
  func.func @_stage_kernel(%arg0: i32, %arg1: i32, %arg2: memref<1x4x16xf32, #tpu.memory_space<vmem>>, %arg3: memref<4x1xf32, #tpu.memory_space<vmem>>, %arg4: memref<4x1xf32, #tpu.memory_space<vmem>>, %arg5: memref<4x4xf32, #tpu.memory_space<vmem>>, %arg6: memref<1x4x16xf32, #tpu.memory_space<vmem>>, %arg7: memref<1x1x4x2xf32, #tpu.memory_space<vmem>>) attributes {dimension_semantics = [#tpu.dimension_semantics<parallel>, #tpu.dimension_semantics<parallel>], iteration_bounds = array<i64: 2, 1>, scalar_prefetch = 0 : i64, scratch_operands = 0 : i64, tpu.core_type = #tpu.core_type<tc>, window_params = [{transform_indices = @transform_0, window_bounds = array<i64: 1, 4, 16>}, {pipeline_mode = #tpu.pipeline_mode<synchronous>, transform_indices = @transform_1, window_bounds = array<i64: 4, 1>}, {pipeline_mode = #tpu.pipeline_mode<synchronous>, transform_indices = @transform_2, window_bounds = array<i64: 4, 1>}, {pipeline_mode = #tpu.pipeline_mode<synchronous>, transform_indices = @transform_3, window_bounds = array<i64: 4, 4>}, {transform_indices = @transform_4, window_bounds = array<i64: 1, 4, 16>}, {transform_indices = @transform_5, window_bounds = array<i64: 1, 1, 4, 2>}]} {
    %c0 = arith.constant 0 : index
    %c0_0 = arith.constant 0 : index
    %c0_1 = arith.constant 0 : index
    %0 = vector.load %arg2[%c0, %c0_0, %c0_1] : memref<1x4x16xf32, #tpu.memory_space<vmem>>, vector<1x4x16xf32>
    %1 = vector.shape_cast %0 : vector<1x4x16xf32> to vector<4x16xf32>
    %c0_2 = arith.constant 0 : index
    %c0_3 = arith.constant 0 : index
    %2 = vector.load %arg5[%c0_2, %c0_3] : memref<4x4xf32, #tpu.memory_space<vmem>>, vector<4x4xf32>
    %cst = arith.constant dense<0.000000e+00> : vector<4x16xf32>
    %3 = tpu.matmul %2, %1, %cst {dimension_numbers = #tpu.dot_dimension_numbers<[1], [0], [0], [1], [0, 0, 1, 1], [], []>} : vector<4x4xf32>, vector<4x16xf32>, vector<4x16xf32> -> vector<4x16xf32>
    %c0_4 = arith.constant 0 : index
    %c0_5 = arith.constant 0 : index
    %c0_6 = arith.constant 0 : index
    %4 = vector.load %arg6[%c0_4, %c0_5, %c0_6] : memref<1x4x16xf32, #tpu.memory_space<vmem>>, vector<1x4x16xf32>
    %5 = vector.shape_cast %4 : vector<1x4x16xf32> to vector<4x16xf32>
    %6 = vector.shape_cast %3 : vector<4x16xf32> to vector<1x4x16xf32>
    tpu.vector_store %arg6[%c0_4, %c0_5, %c0_6], %6 {strides = array<i32>} : memref<1x4x16xf32, #tpu.memory_space<vmem>>, vector<1x4x16xf32>,
    %cst_7 = arith.constant dense<0.000000e+00> : vector<4xf32>
    %7 = vector.multi_reduction <add>, %3, %cst_7 [1] : vector<4x16xf32> to vector<4xf32>
    %8 = vector.shape_cast %7 : vector<4xf32> to vector<4x1xf32>
    %9 = arith.mulf %3, %3 : vector<4x16xf32>
    %cst_8 = arith.constant dense<0.000000e+00> : vector<4xf32>
    %10 = vector.multi_reduction <add>, %9, %cst_8 [1] : vector<4x16xf32> to vector<4xf32>
    %11 = vector.shape_cast %10 : vector<4xf32> to vector<4x1xf32>
    %12 = tpu.concatenate %8, %11 in 1 : vector<4x1xf32>, vector<4x1xf32> -> vector<4x2xf32>
    %c0_9 = arith.constant 0 : index
    %c0_10 = arith.constant 0 : index
    %c0_11 = arith.constant 0 : index
    %c0_12 = arith.constant 0 : index
    %13 = vector.load %arg7[%c0_9, %c0_10, %c0_11, %c0_12] : memref<1x1x4x2xf32, #tpu.memory_space<vmem>>, vector<1x1x4x2xf32>
    %14 = vector.shape_cast %13 : vector<1x1x4x2xf32> to vector<4x2xf32>
    %15 = vector.shape_cast %12 : vector<4x2xf32> to vector<1x1x4x2xf32>
    tpu.vector_store %arg7[%c0_9, %c0_10, %c0_11, %c0_12], %15 {strides = array<i32>} : memref<1x1x4x2xf32, #tpu.memory_space<vmem>>, vector<1x1x4x2xf32>,
    return
  }
  func.func @transform_0(%arg0: i32, %arg1: i32) -> (i32, i32, i32) {
    %c0_i32 = arith.constant 0 : i32
    %c0_i32_0 = arith.constant 0 : i32
    return %arg0, %c0_i32, %arg1 : i32, i32, i32
  }
  func.func @transform_1(%arg0: i32, %arg1: i32) -> (i32, i32) {
    %c0_i32 = arith.constant 0 : i32
    %c0_i32_0 = arith.constant 0 : i32
    %c0_i32_1 = arith.constant 0 : i32
    return %c0_i32, %c0_i32_0 : i32, i32
  }
  func.func @transform_2(%arg0: i32, %arg1: i32) -> (i32, i32) {
    %c0_i32 = arith.constant 0 : i32
    %c0_i32_0 = arith.constant 0 : i32
    %c0_i32_1 = arith.constant 0 : i32
    return %c0_i32, %c0_i32_0 : i32, i32
  }
  func.func @transform_3(%arg0: i32, %arg1: i32) -> (i32, i32) {
    %c0_i32 = arith.constant 0 : i32
    %c0_i32_0 = arith.constant 0 : i32
    %c0_i32_1 = arith.constant 0 : i32
    return %c0_i32, %c0_i32_0 : i32, i32
  }
  func.func @transform_4(%arg0: i32, %arg1: i32) -> (i32, i32, i32) {
    %c0_i32 = arith.constant 0 : i32
    %c0_i32_0 = arith.constant 0 : i32
    return %arg0, %c0_i32, %arg1 : i32, i32, i32
  }
  func.func @transform_5(%arg0: i32, %arg1: i32) -> (i32, i32, i32, i32) {
    %c0_i32 = arith.constant 0 : i32
    %c0_i32_0 = arith.constant 0 : i32
    %c0_i32_1 = arith.constant 0 : i32
    return %arg0, %arg1, %c0_i32, %c0_i32_0 : i32, i32, i32, i32
  }
}

module attributes {stable_mosaic.version = 11 : i64} {
  func.func @_stage_kernel(%arg0: i32, %arg1: i32, %arg2: memref<1x4x16xf32, #tpu.memory_space<vmem>>, %arg3: memref<4x1xf32, #tpu.memory_space<vmem>>, %arg4: memref<4x1xf32, #tpu.memory_space<vmem>>, %arg5: memref<4x4xf32, #tpu.memory_space<vmem>>, %arg6: memref<1x4x16xf32, #tpu.memory_space<vmem>>, %arg7: memref<1x1x4x2xf32, #tpu.memory_space<vmem>>) attributes {dimension_semantics = [#tpu.dimension_semantics<parallel>, #tpu.dimension_semantics<parallel>], iteration_bounds = array<i64: 2, 1>, scalar_prefetch = 0 : i64, scratch_operands = 0 : i64, tpu.core_type = #tpu.core_type<tc>, window_params = [{transform_indices = @transform_0, window_bounds = array<i64: 1, 4, 16>}, {pipeline_mode = #tpu.pipeline_mode<synchronous>, transform_indices = @transform_1, window_bounds = array<i64: 4, 1>}, {pipeline_mode = #tpu.pipeline_mode<synchronous>, transform_indices = @transform_2, window_bounds = array<i64: 4, 1>}, {pipeline_mode = #tpu.pipeline_mode<synchronous>, transform_indices = @transform_3, window_bounds = array<i64: 4, 4>}, {transform_indices = @transform_4, window_bounds = array<i64: 1, 4, 16>}, {transform_indices = @transform_5, window_bounds = array<i64: 1, 1, 4, 2>}]} {
    %c0 = arith.constant 0 : index
    %c0_0 = arith.constant 0 : index
    %0 = vector.load %arg3[%c0, %c0_0] : memref<4x1xf32, #tpu.memory_space<vmem>>, vector<4x1xf32>
    %c0_1 = arith.constant 0 : index
    %c0_2 = arith.constant 0 : index
    %1 = vector.load %arg4[%c0_1, %c0_2] : memref<4x1xf32, #tpu.memory_space<vmem>>, vector<4x1xf32>
    %c0_3 = arith.constant 0 : index
    %c0_4 = arith.constant 0 : index
    %c0_5 = arith.constant 0 : index
    %2 = vector.load %arg2[%c0_3, %c0_4, %c0_5] : memref<1x4x16xf32, #tpu.memory_space<vmem>>, vector<1x4x16xf32>
    %3 = vector.shape_cast %2 : vector<1x4x16xf32> to vector<4x16xf32>
    %4 = vector.broadcast %0 : vector<4x1xf32> to vector<4x16xf32>
    %5 = arith.mulf %3, %4 : vector<4x16xf32>
    %6 = vector.broadcast %1 : vector<4x1xf32> to vector<4x16xf32>
    %7 = arith.addf %5, %6 : vector<4x16xf32>
    %cst = arith.constant 0.000000e+00 : f32
    %8 = vector.broadcast %cst : f32 to vector<4x16xf32>
    %9 = arith.subf %8, %7 : vector<4x16xf32>
    %10 = math.exp %9 : vector<4x16xf32>
    %cst_6 = arith.constant 1.000000e+00 : f32
    %11 = vector.broadcast %cst_6 : f32 to vector<4x16xf32>
    %12 = arith.addf %11, %10 : vector<4x16xf32>
    %cst_7 = arith.constant 1.000000e+00 : f32
    %13 = vector.broadcast %cst_7 : f32 to vector<4x16xf32>
    %14 = arith.divf %13, %12 : vector<4x16xf32>
    %15 = arith.mulf %7, %14 : vector<4x16xf32>
    %c0_8 = arith.constant 0 : index
    %c0_9 = arith.constant 0 : index
    %16 = vector.load %arg5[%c0_8, %c0_9] : memref<4x4xf32, #tpu.memory_space<vmem>>, vector<4x4xf32>
    %cst_10 = arith.constant dense<0.000000e+00> : vector<4x16xf32>
    %17 = tpu.matmul %16, %15, %cst_10 {dimension_numbers = #tpu.dot_dimension_numbers<[1], [0], [0], [1], [0, 0, 1, 1], [], []>} : vector<4x4xf32>, vector<4x16xf32>, vector<4x16xf32> -> vector<4x16xf32>
    %c0_11 = arith.constant 0 : index
    %c0_12 = arith.constant 0 : index
    %c0_13 = arith.constant 0 : index
    %18 = vector.load %arg6[%c0_11, %c0_12, %c0_13] : memref<1x4x16xf32, #tpu.memory_space<vmem>>, vector<1x4x16xf32>
    %19 = vector.shape_cast %18 : vector<1x4x16xf32> to vector<4x16xf32>
    %20 = vector.shape_cast %17 : vector<4x16xf32> to vector<1x4x16xf32>
    tpu.vector_store %arg6[%c0_11, %c0_12, %c0_13], %20 {strides = array<i32>} : memref<1x4x16xf32, #tpu.memory_space<vmem>>, vector<1x4x16xf32>,
    %cst_14 = arith.constant dense<0.000000e+00> : vector<4xf32>
    %21 = vector.multi_reduction <add>, %17, %cst_14 [1] : vector<4x16xf32> to vector<4xf32>
    %22 = vector.shape_cast %21 : vector<4xf32> to vector<4x1xf32>
    %23 = arith.mulf %17, %17 : vector<4x16xf32>
    %cst_15 = arith.constant dense<0.000000e+00> : vector<4xf32>
    %24 = vector.multi_reduction <add>, %23, %cst_15 [1] : vector<4x16xf32> to vector<4xf32>
    %25 = vector.shape_cast %24 : vector<4xf32> to vector<4x1xf32>
    %26 = tpu.concatenate %22, %25 in 1 : vector<4x1xf32>, vector<4x1xf32> -> vector<4x2xf32>
    %c0_16 = arith.constant 0 : index
    %c0_17 = arith.constant 0 : index
    %c0_18 = arith.constant 0 : index
    %c0_19 = arith.constant 0 : index
    %27 = vector.load %arg7[%c0_16, %c0_17, %c0_18, %c0_19] : memref<1x1x4x2xf32, #tpu.memory_space<vmem>>, vector<1x1x4x2xf32>
    %28 = vector.shape_cast %27 : vector<1x1x4x2xf32> to vector<4x2xf32>
    %29 = vector.shape_cast %26 : vector<4x2xf32> to vector<1x1x4x2xf32>
    tpu.vector_store %arg7[%c0_16, %c0_17, %c0_18, %c0_19], %29 {strides = array<i32>} : memref<1x1x4x2xf32, #tpu.memory_space<vmem>>, vector<1x1x4x2xf32>,
    return
  }
  func.func @transform_0(%arg0: i32, %arg1: i32) -> (i32, i32, i32) {
    %c0_i32 = arith.constant 0 : i32
    %c0_i32_0 = arith.constant 0 : i32
    return %arg0, %c0_i32, %arg1 : i32, i32, i32
  }
  func.func @transform_1(%arg0: i32, %arg1: i32) -> (i32, i32) {
    %c0_i32 = arith.constant 0 : i32
    %c0_i32_0 = arith.constant 0 : i32
    %c0_i32_1 = arith.constant 0 : i32
    return %c0_i32, %c0_i32_0 : i32, i32
  }
  func.func @transform_2(%arg0: i32, %arg1: i32) -> (i32, i32) {
    %c0_i32 = arith.constant 0 : i32
    %c0_i32_0 = arith.constant 0 : i32
    %c0_i32_1 = arith.constant 0 : i32
    return %c0_i32, %c0_i32_0 : i32, i32
  }
  func.func @transform_3(%arg0: i32, %arg1: i32) -> (i32, i32) {
    %c0_i32 = arith.constant 0 : i32
    %c0_i32_0 = arith.constant 0 : i32
    %c0_i32_1 = arith.constant 0 : i32
    return %c0_i32, %c0_i32_0 : i32, i32
  }
  func.func @transform_4(%arg0: i32, %arg1: i32) -> (i32, i32, i32) {
    %c0_i32 = arith.constant 0 : i32
    %c0_i32_0 = arith.constant 0 : i32
    return %arg0, %c0_i32, %arg1 : i32, i32, i32
  }
  func.func @transform_5(%arg0: i32, %arg1: i32) -> (i32, i32, i32, i32) {
    %c0_i32 = arith.constant 0 : i32
    %c0_i32_0 = arith.constant 0 : i32
    %c0_i32_1 = arith.constant 0 : i32
    return %arg0, %arg1, %c0_i32, %c0_i32_0 : i32, i32, i32, i32
  }
}

module attributes {stable_mosaic.version = 11 : i64} {
  func.func @_stage_kernel(%arg0: i32, %arg1: i32, %arg2: memref<1x4x16xf32, #tpu.memory_space<vmem>>, %arg3: memref<4x1xf32, #tpu.memory_space<vmem>>, %arg4: memref<4x1xf32, #tpu.memory_space<vmem>>, %arg5: memref<4x3xf32, #tpu.memory_space<vmem>>, %arg6: memref<1x4x16xf32, #tpu.memory_space<vmem>>, %arg7: memref<1x4x16xf32, #tpu.memory_space<vmem>>, %arg8: memref<1x1x4x2xf32, #tpu.memory_space<vmem>>) attributes {dimension_semantics = [#tpu.dimension_semantics<parallel>, #tpu.dimension_semantics<parallel>], iteration_bounds = array<i64: 2, 1>, scalar_prefetch = 0 : i64, scratch_operands = 0 : i64, tpu.core_type = #tpu.core_type<tc>, window_params = [{transform_indices = @transform_0, window_bounds = array<i64: 1, 4, 16>}, {pipeline_mode = #tpu.pipeline_mode<synchronous>, transform_indices = @transform_1, window_bounds = array<i64: 4, 1>}, {pipeline_mode = #tpu.pipeline_mode<synchronous>, transform_indices = @transform_2, window_bounds = array<i64: 4, 1>}, {pipeline_mode = #tpu.pipeline_mode<synchronous>, transform_indices = @transform_3, window_bounds = array<i64: 4, 3>}, {transform_indices = @transform_4, window_bounds = array<i64: 1, 4, 16>}, {transform_indices = @transform_5, window_bounds = array<i64: 1, 4, 16>}, {transform_indices = @transform_6, window_bounds = array<i64: 1, 1, 4, 2>}]} {
    %c0 = arith.constant 0 : index
    %c0_0 = arith.constant 0 : index
    %0 = vector.load %arg3[%c0, %c0_0] : memref<4x1xf32, #tpu.memory_space<vmem>>, vector<4x1xf32>
    %c0_1 = arith.constant 0 : index
    %c0_2 = arith.constant 0 : index
    %1 = vector.load %arg4[%c0_1, %c0_2] : memref<4x1xf32, #tpu.memory_space<vmem>>, vector<4x1xf32>
    %c0_3 = arith.constant 0 : index
    %c0_4 = arith.constant 0 : index
    %c0_5 = arith.constant 0 : index
    %2 = vector.load %arg2[%c0_3, %c0_4, %c0_5] : memref<1x4x16xf32, #tpu.memory_space<vmem>>, vector<1x4x16xf32>
    %3 = vector.shape_cast %2 : vector<1x4x16xf32> to vector<4x16xf32>
    %4 = vector.broadcast %0 : vector<4x1xf32> to vector<4x16xf32>
    %5 = arith.mulf %3, %4 : vector<4x16xf32>
    %6 = vector.broadcast %1 : vector<4x1xf32> to vector<4x16xf32>
    %7 = arith.addf %5, %6 : vector<4x16xf32>
    %cst = arith.constant 0.000000e+00 : f32
    %8 = vector.broadcast %cst : f32 to vector<4x16xf32>
    %9 = arith.subf %8, %7 : vector<4x16xf32>
    %10 = math.exp %9 : vector<4x16xf32>
    %cst_6 = arith.constant 1.000000e+00 : f32
    %11 = vector.broadcast %cst_6 : f32 to vector<4x16xf32>
    %12 = arith.addf %11, %10 : vector<4x16xf32>
    %cst_7 = arith.constant 1.000000e+00 : f32
    %13 = vector.broadcast %cst_7 : f32 to vector<4x16xf32>
    %14 = arith.divf %13, %12 : vector<4x16xf32>
    %15 = arith.mulf %7, %14 : vector<4x16xf32>
    %c0_8 = arith.constant 0 : index
    %c0_9 = arith.constant 0 : index
    %c0_10 = arith.constant 0 : index
    %16 = vector.load %arg6[%c0_8, %c0_9, %c0_10] : memref<1x4x16xf32, #tpu.memory_space<vmem>>, vector<1x4x16xf32>
    %17 = vector.shape_cast %16 : vector<1x4x16xf32> to vector<4x16xf32>
    %18 = vector.shape_cast %15 : vector<4x16xf32> to vector<1x4x16xf32>
    tpu.vector_store %arg6[%c0_8, %c0_9, %c0_10], %18 {strides = array<i32>} : memref<1x4x16xf32, #tpu.memory_space<vmem>>, vector<1x4x16xf32>,
    %cst_11 = arith.constant 0.000000e+00 : f32
    %19 = vector.broadcast %cst_11 : f32 to vector<4x1xf32>
    %cst_12 = arith.constant 0.000000e+00 : f32
    %20 = vector.broadcast %cst_12 : f32 to vector<4x1xf32>
    %21 = vector.extract_strided_slice %15 {offsets = [0, 0], sizes = [4, 15], strides = [1, 1]} : vector<4x16xf32> to vector<4x15xf32>
    %22 = tpu.concatenate %19, %21 in 1 : vector<4x1xf32>, vector<4x15xf32> -> vector<4x16xf32>
    %23 = vector.extract_strided_slice %15 {offsets = [0, 1], sizes = [4, 15], strides = [1, 1]} : vector<4x16xf32> to vector<4x15xf32>
    %24 = tpu.concatenate %23, %20 in 1 : vector<4x15xf32>, vector<4x1xf32> -> vector<4x16xf32>
    %c0_13 = arith.constant 0 : index
    %c0_14 = arith.constant 0 : index
    %25 = vector.load %arg5[%c0_13, %c0_14] : memref<4x3xf32, #tpu.memory_space<vmem>>, vector<4x3xf32>
    %26 = vector.extract_strided_slice %25 {offsets = [0, 0], sizes = [4, 1], strides = [1, 1]} : vector<4x3xf32> to vector<4x1xf32>
    %27 = vector.broadcast %26 : vector<4x1xf32> to vector<4x16xf32>
    %28 = arith.mulf %27, %22 : vector<4x16xf32>
    %29 = vector.extract_strided_slice %25 {offsets = [0, 1], sizes = [4, 1], strides = [1, 1]} : vector<4x3xf32> to vector<4x1xf32>
    %30 = vector.broadcast %29 : vector<4x1xf32> to vector<4x16xf32>
    %31 = arith.mulf %30, %15 : vector<4x16xf32>
    %32 = arith.addf %28, %31 : vector<4x16xf32>
    %33 = vector.extract_strided_slice %25 {offsets = [0, 2], sizes = [4, 1], strides = [1, 1]} : vector<4x3xf32> to vector<4x1xf32>
    %34 = vector.broadcast %33 : vector<4x1xf32> to vector<4x16xf32>
    %35 = arith.mulf %34, %24 : vector<4x16xf32>
    %36 = arith.addf %32, %35 : vector<4x16xf32>
    %c0_15 = arith.constant 0 : index
    %c0_16 = arith.constant 0 : index
    %c0_17 = arith.constant 0 : index
    %37 = vector.load %arg7[%c0_15, %c0_16, %c0_17] : memref<1x4x16xf32, #tpu.memory_space<vmem>>, vector<1x4x16xf32>
    %38 = vector.shape_cast %37 : vector<1x4x16xf32> to vector<4x16xf32>
    %39 = vector.shape_cast %36 : vector<4x16xf32> to vector<1x4x16xf32>
    tpu.vector_store %arg7[%c0_15, %c0_16, %c0_17], %39 {strides = array<i32>} : memref<1x4x16xf32, #tpu.memory_space<vmem>>, vector<1x4x16xf32>,
    %cst_18 = arith.constant dense<0.000000e+00> : vector<4xf32>
    %40 = vector.multi_reduction <add>, %36, %cst_18 [1] : vector<4x16xf32> to vector<4xf32>
    %41 = vector.shape_cast %40 : vector<4xf32> to vector<4x1xf32>
    %42 = arith.mulf %36, %36 : vector<4x16xf32>
    %cst_19 = arith.constant dense<0.000000e+00> : vector<4xf32>
    %43 = vector.multi_reduction <add>, %42, %cst_19 [1] : vector<4x16xf32> to vector<4xf32>
    %44 = vector.shape_cast %43 : vector<4xf32> to vector<4x1xf32>
    %45 = tpu.concatenate %41, %44 in 1 : vector<4x1xf32>, vector<4x1xf32> -> vector<4x2xf32>
    %c0_20 = arith.constant 0 : index
    %c0_21 = arith.constant 0 : index
    %c0_22 = arith.constant 0 : index
    %c0_23 = arith.constant 0 : index
    %46 = vector.load %arg8[%c0_20, %c0_21, %c0_22, %c0_23] : memref<1x1x4x2xf32, #tpu.memory_space<vmem>>, vector<1x1x4x2xf32>
    %47 = vector.shape_cast %46 : vector<1x1x4x2xf32> to vector<4x2xf32>
    %48 = vector.shape_cast %45 : vector<4x2xf32> to vector<1x1x4x2xf32>
    tpu.vector_store %arg8[%c0_20, %c0_21, %c0_22, %c0_23], %48 {strides = array<i32>} : memref<1x1x4x2xf32, #tpu.memory_space<vmem>>, vector<1x1x4x2xf32>,
    return
  }
  func.func @transform_0(%arg0: i32, %arg1: i32) -> (i32, i32, i32) {
    %c0_i32 = arith.constant 0 : i32
    %c0_i32_0 = arith.constant 0 : i32
    return %arg0, %c0_i32, %arg1 : i32, i32, i32
  }
  func.func @transform_1(%arg0: i32, %arg1: i32) -> (i32, i32) {
    %c0_i32 = arith.constant 0 : i32
    %c0_i32_0 = arith.constant 0 : i32
    %c0_i32_1 = arith.constant 0 : i32
    return %c0_i32, %c0_i32_0 : i32, i32
  }
  func.func @transform_2(%arg0: i32, %arg1: i32) -> (i32, i32) {
    %c0_i32 = arith.constant 0 : i32
    %c0_i32_0 = arith.constant 0 : i32
    %c0_i32_1 = arith.constant 0 : i32
    return %c0_i32, %c0_i32_0 : i32, i32
  }
  func.func @transform_3(%arg0: i32, %arg1: i32) -> (i32, i32) {
    %c0_i32 = arith.constant 0 : i32
    %c0_i32_0 = arith.constant 0 : i32
    %c0_i32_1 = arith.constant 0 : i32
    return %c0_i32, %c0_i32_0 : i32, i32
  }
  func.func @transform_4(%arg0: i32, %arg1: i32) -> (i32, i32, i32) {
    %c0_i32 = arith.constant 0 : i32
    %c0_i32_0 = arith.constant 0 : i32
    return %arg0, %c0_i32, %arg1 : i32, i32, i32
  }
  func.func @transform_5(%arg0: i32, %arg1: i32) -> (i32, i32, i32) {
    %c0_i32 = arith.constant 0 : i32
    %c0_i32_0 = arith.constant 0 : i32
    return %arg0, %c0_i32, %arg1 : i32, i32, i32
  }
  func.func @transform_6(%arg0: i32, %arg1: i32) -> (i32, i32, i32, i32) {
    %c0_i32 = arith.constant 0 : i32
    %c0_i32_0 = arith.constant 0 : i32
    %c0_i32_1 = arith.constant 0 : i32
    return %arg0, %arg1, %c0_i32, %c0_i32_0 : i32, i32, i32, i32
  }
}

module attributes {stable_mosaic.version = 11 : i64} {
  func.func @_stage_kernel(%arg0: i32, %arg1: i32, %arg2: memref<1x4x16xf32, #tpu.memory_space<vmem>>, %arg3: memref<4x1xf32, #tpu.memory_space<vmem>>, %arg4: memref<4x1xf32, #tpu.memory_space<vmem>>, %arg5: memref<4x3xf32, #tpu.memory_space<vmem>>, %arg6: memref<1x4x16xf32, #tpu.memory_space<vmem>>, %arg7: memref<1x1x4x2xf32, #tpu.memory_space<vmem>>) attributes {dimension_semantics = [#tpu.dimension_semantics<parallel>, #tpu.dimension_semantics<parallel>], iteration_bounds = array<i64: 2, 1>, scalar_prefetch = 0 : i64, scratch_operands = 0 : i64, tpu.core_type = #tpu.core_type<tc>, window_params = [{transform_indices = @transform_0, window_bounds = array<i64: 1, 4, 16>}, {pipeline_mode = #tpu.pipeline_mode<synchronous>, transform_indices = @transform_1, window_bounds = array<i64: 4, 1>}, {pipeline_mode = #tpu.pipeline_mode<synchronous>, transform_indices = @transform_2, window_bounds = array<i64: 4, 1>}, {pipeline_mode = #tpu.pipeline_mode<synchronous>, transform_indices = @transform_3, window_bounds = array<i64: 4, 3>}, {transform_indices = @transform_4, window_bounds = array<i64: 1, 4, 16>}, {transform_indices = @transform_5, window_bounds = array<i64: 1, 1, 4, 2>}]} {
    %c0 = arith.constant 0 : index
    %c0_0 = arith.constant 0 : index
    %0 = vector.load %arg3[%c0, %c0_0] : memref<4x1xf32, #tpu.memory_space<vmem>>, vector<4x1xf32>
    %c0_1 = arith.constant 0 : index
    %c0_2 = arith.constant 0 : index
    %1 = vector.load %arg4[%c0_1, %c0_2] : memref<4x1xf32, #tpu.memory_space<vmem>>, vector<4x1xf32>
    %c0_3 = arith.constant 0 : index
    %c0_4 = arith.constant 0 : index
    %c0_5 = arith.constant 0 : index
    %2 = vector.load %arg2[%c0_3, %c0_4, %c0_5] : memref<1x4x16xf32, #tpu.memory_space<vmem>>, vector<1x4x16xf32>
    %3 = vector.shape_cast %2 : vector<1x4x16xf32> to vector<4x16xf32>
    %4 = vector.broadcast %0 : vector<4x1xf32> to vector<4x16xf32>
    %5 = arith.mulf %3, %4 : vector<4x16xf32>
    %6 = vector.broadcast %1 : vector<4x1xf32> to vector<4x16xf32>
    %7 = arith.addf %5, %6 : vector<4x16xf32>
    %cst = arith.constant 0.000000e+00 : f32
    %8 = vector.broadcast %cst : f32 to vector<4x16xf32>
    %9 = arith.subf %8, %7 : vector<4x16xf32>
    %10 = math.exp %9 : vector<4x16xf32>
    %cst_6 = arith.constant 1.000000e+00 : f32
    %11 = vector.broadcast %cst_6 : f32 to vector<4x16xf32>
    %12 = arith.addf %11, %10 : vector<4x16xf32>
    %cst_7 = arith.constant 1.000000e+00 : f32
    %13 = vector.broadcast %cst_7 : f32 to vector<4x16xf32>
    %14 = arith.divf %13, %12 : vector<4x16xf32>
    %15 = arith.mulf %7, %14 : vector<4x16xf32>
    %cst_8 = arith.constant 0.000000e+00 : f32
    %16 = vector.broadcast %cst_8 : f32 to vector<4x1xf32>
    %cst_9 = arith.constant 0.000000e+00 : f32
    %17 = vector.broadcast %cst_9 : f32 to vector<4x1xf32>
    %18 = vector.extract_strided_slice %15 {offsets = [0, 0], sizes = [4, 15], strides = [1, 1]} : vector<4x16xf32> to vector<4x15xf32>
    %19 = tpu.concatenate %16, %18 in 1 : vector<4x1xf32>, vector<4x15xf32> -> vector<4x16xf32>
    %20 = vector.extract_strided_slice %15 {offsets = [0, 1], sizes = [4, 15], strides = [1, 1]} : vector<4x16xf32> to vector<4x15xf32>
    %21 = tpu.concatenate %20, %17 in 1 : vector<4x15xf32>, vector<4x1xf32> -> vector<4x16xf32>
    %c0_10 = arith.constant 0 : index
    %c0_11 = arith.constant 0 : index
    %22 = vector.load %arg5[%c0_10, %c0_11] : memref<4x3xf32, #tpu.memory_space<vmem>>, vector<4x3xf32>
    %23 = vector.extract_strided_slice %22 {offsets = [0, 0], sizes = [4, 1], strides = [1, 1]} : vector<4x3xf32> to vector<4x1xf32>
    %24 = vector.broadcast %23 : vector<4x1xf32> to vector<4x16xf32>
    %25 = arith.mulf %24, %19 : vector<4x16xf32>
    %26 = vector.extract_strided_slice %22 {offsets = [0, 1], sizes = [4, 1], strides = [1, 1]} : vector<4x3xf32> to vector<4x1xf32>
    %27 = vector.broadcast %26 : vector<4x1xf32> to vector<4x16xf32>
    %28 = arith.mulf %27, %15 : vector<4x16xf32>
    %29 = arith.addf %25, %28 : vector<4x16xf32>
    %30 = vector.extract_strided_slice %22 {offsets = [0, 2], sizes = [4, 1], strides = [1, 1]} : vector<4x3xf32> to vector<4x1xf32>
    %31 = vector.broadcast %30 : vector<4x1xf32> to vector<4x16xf32>
    %32 = arith.mulf %31, %21 : vector<4x16xf32>
    %33 = arith.addf %29, %32 : vector<4x16xf32>
    %c0_12 = arith.constant 0 : index
    %c0_13 = arith.constant 0 : index
    %c0_14 = arith.constant 0 : index
    %34 = vector.load %arg6[%c0_12, %c0_13, %c0_14] : memref<1x4x16xf32, #tpu.memory_space<vmem>>, vector<1x4x16xf32>
    %35 = vector.shape_cast %34 : vector<1x4x16xf32> to vector<4x16xf32>
    %36 = vector.shape_cast %33 : vector<4x16xf32> to vector<1x4x16xf32>
    tpu.vector_store %arg6[%c0_12, %c0_13, %c0_14], %36 {strides = array<i32>} : memref<1x4x16xf32, #tpu.memory_space<vmem>>, vector<1x4x16xf32>,
    %cst_15 = arith.constant dense<0.000000e+00> : vector<4xf32>
    %37 = vector.multi_reduction <add>, %33, %cst_15 [1] : vector<4x16xf32> to vector<4xf32>
    %38 = vector.shape_cast %37 : vector<4xf32> to vector<4x1xf32>
    %39 = arith.mulf %33, %33 : vector<4x16xf32>
    %cst_16 = arith.constant dense<0.000000e+00> : vector<4xf32>
    %40 = vector.multi_reduction <add>, %39, %cst_16 [1] : vector<4x16xf32> to vector<4xf32>
    %41 = vector.shape_cast %40 : vector<4xf32> to vector<4x1xf32>
    %42 = tpu.concatenate %38, %41 in 1 : vector<4x1xf32>, vector<4x1xf32> -> vector<4x2xf32>
    %c0_17 = arith.constant 0 : index
    %c0_18 = arith.constant 0 : index
    %c0_19 = arith.constant 0 : index
    %c0_20 = arith.constant 0 : index
    %43 = vector.load %arg7[%c0_17, %c0_18, %c0_19, %c0_20] : memref<1x1x4x2xf32, #tpu.memory_space<vmem>>, vector<1x1x4x2xf32>
    %44 = vector.shape_cast %43 : vector<1x1x4x2xf32> to vector<4x2xf32>
    %45 = vector.shape_cast %42 : vector<4x2xf32> to vector<1x1x4x2xf32>
    tpu.vector_store %arg7[%c0_17, %c0_18, %c0_19, %c0_20], %45 {strides = array<i32>} : memref<1x1x4x2xf32, #tpu.memory_space<vmem>>, vector<1x1x4x2xf32>,
    return
  }
  func.func @transform_0(%arg0: i32, %arg1: i32) -> (i32, i32, i32) {
    %c0_i32 = arith.constant 0 : i32
    %c0_i32_0 = arith.constant 0 : i32
    return %arg0, %c0_i32, %arg1 : i32, i32, i32
  }
  func.func @transform_1(%arg0: i32, %arg1: i32) -> (i32, i32) {
    %c0_i32 = arith.constant 0 : i32
    %c0_i32_0 = arith.constant 0 : i32
    %c0_i32_1 = arith.constant 0 : i32
    return %c0_i32, %c0_i32_0 : i32, i32
  }
  func.func @transform_2(%arg0: i32, %arg1: i32) -> (i32, i32) {
    %c0_i32 = arith.constant 0 : i32
    %c0_i32_0 = arith.constant 0 : i32
    %c0_i32_1 = arith.constant 0 : i32
    return %c0_i32, %c0_i32_0 : i32, i32
  }
  func.func @transform_3(%arg0: i32, %arg1: i32) -> (i32, i32) {
    %c0_i32 = arith.constant 0 : i32
    %c0_i32_0 = arith.constant 0 : i32
    %c0_i32_1 = arith.constant 0 : i32
    return %c0_i32, %c0_i32_0 : i32, i32
  }
  func.func @transform_4(%arg0: i32, %arg1: i32) -> (i32, i32, i32) {
    %c0_i32 = arith.constant 0 : i32
    %c0_i32_0 = arith.constant 0 : i32
    return %arg0, %c0_i32, %arg1 : i32, i32, i32
  }
  func.func @transform_5(%arg0: i32, %arg1: i32) -> (i32, i32, i32, i32) {
    %c0_i32 = arith.constant 0 : i32
    %c0_i32_0 = arith.constant 0 : i32
    %c0_i32_1 = arith.constant 0 : i32
    return %arg0, %arg1, %c0_i32, %c0_i32_0 : i32, i32, i32, i32
  }
}

module attributes {stable_mosaic.version = 11 : i64} {
  func.func @_apply_kernel(%arg0: i32, %arg1: i32, %arg2: memref<1x4x16xf32, #tpu.memory_space<vmem>>, %arg3: memref<4x1xf32, #tpu.memory_space<vmem>>, %arg4: memref<4x1xf32, #tpu.memory_space<vmem>>, %arg5: memref<1x4x16xf32, #tpu.memory_space<vmem>>) attributes {dimension_semantics = [#tpu.dimension_semantics<parallel>, #tpu.dimension_semantics<parallel>], iteration_bounds = array<i64: 2, 1>, scalar_prefetch = 0 : i64, scratch_operands = 0 : i64, tpu.core_type = #tpu.core_type<tc>, window_params = [{transform_indices = @transform_0, window_bounds = array<i64: 1, 4, 16>}, {pipeline_mode = #tpu.pipeline_mode<synchronous>, transform_indices = @transform_1, window_bounds = array<i64: 4, 1>}, {pipeline_mode = #tpu.pipeline_mode<synchronous>, transform_indices = @transform_2, window_bounds = array<i64: 4, 1>}, {transform_indices = @transform_3, window_bounds = array<i64: 1, 4, 16>}]} {
    %c0 = arith.constant 0 : index
    %c0_0 = arith.constant 0 : index
    %c0_1 = arith.constant 0 : index
    %0 = vector.load %arg2[%c0, %c0_0, %c0_1] : memref<1x4x16xf32, #tpu.memory_space<vmem>>, vector<1x4x16xf32>
    %1 = vector.shape_cast %0 : vector<1x4x16xf32> to vector<4x16xf32>
    %c0_2 = arith.constant 0 : index
    %c0_3 = arith.constant 0 : index
    %2 = vector.load %arg3[%c0_2, %c0_3] : memref<4x1xf32, #tpu.memory_space<vmem>>, vector<4x1xf32>
    %3 = vector.broadcast %2 : vector<4x1xf32> to vector<4x16xf32>
    %4 = arith.mulf %1, %3 : vector<4x16xf32>
    %c0_4 = arith.constant 0 : index
    %c0_5 = arith.constant 0 : index
    %5 = vector.load %arg4[%c0_4, %c0_5] : memref<4x1xf32, #tpu.memory_space<vmem>>, vector<4x1xf32>
    %6 = vector.broadcast %5 : vector<4x1xf32> to vector<4x16xf32>
    %7 = arith.addf %4, %6 : vector<4x16xf32>
    %cst = arith.constant 0.000000e+00 : f32
    %8 = vector.broadcast %cst : f32 to vector<4x16xf32>
    %9 = arith.subf %8, %7 : vector<4x16xf32>
    %10 = math.exp %9 : vector<4x16xf32>
    %cst_6 = arith.constant 1.000000e+00 : f32
    %11 = vector.broadcast %cst_6 : f32 to vector<4x16xf32>
    %12 = arith.addf %11, %10 : vector<4x16xf32>
    %cst_7 = arith.constant 1.000000e+00 : f32
    %13 = vector.broadcast %cst_7 : f32 to vector<4x16xf32>
    %14 = arith.divf %13, %12 : vector<4x16xf32>
    %15 = arith.mulf %7, %14 : vector<4x16xf32>
    %c0_8 = arith.constant 0 : index
    %c0_9 = arith.constant 0 : index
    %c0_10 = arith.constant 0 : index
    %16 = vector.load %arg5[%c0_8, %c0_9, %c0_10] : memref<1x4x16xf32, #tpu.memory_space<vmem>>, vector<1x4x16xf32>
    %17 = vector.shape_cast %16 : vector<1x4x16xf32> to vector<4x16xf32>
    %18 = vector.shape_cast %15 : vector<4x16xf32> to vector<1x4x16xf32>
    tpu.vector_store %arg5[%c0_8, %c0_9, %c0_10], %18 {strides = array<i32>} : memref<1x4x16xf32, #tpu.memory_space<vmem>>, vector<1x4x16xf32>,
    return
  }
  func.func @transform_0(%arg0: i32, %arg1: i32) -> (i32, i32, i32) {
    %c0_i32 = arith.constant 0 : i32
    %c0_i32_0 = arith.constant 0 : i32
    return %arg0, %c0_i32, %arg1 : i32, i32, i32
  }
  func.func @transform_1(%arg0: i32, %arg1: i32) -> (i32, i32) {
    %c0_i32 = arith.constant 0 : i32
    %c0_i32_0 = arith.constant 0 : i32
    %c0_i32_1 = arith.constant 0 : i32
    return %c0_i32, %c0_i32_0 : i32, i32
  }
  func.func @transform_2(%arg0: i32, %arg1: i32) -> (i32, i32) {
    %c0_i32 = arith.constant 0 : i32
    %c0_i32_0 = arith.constant 0 : i32
    %c0_i32_1 = arith.constant 0 : i32
    return %c0_i32, %c0_i32_0 : i32, i32
  }
  func.func @transform_3(%arg0: i32, %arg1: i32) -> (i32, i32, i32) {
    %c0_i32 = arith.constant 0 : i32
    %c0_i32_0 = arith.constant 0 : i32
    return %arg0, %c0_i32, %arg1 : i32, i32, i32
  }
}

</mosaic_0001>

<llo_original>
// kernel: convblock_forward.6
$region0: #{convblock_forward.6}
  #allocation0 [shape = 'u32[]', space=smem, size = 0x4, offset = 0x4, fixed_abs, tag = 'smem constant byte address 0x4 - core index']
  #allocation1 [shape = 'u32[144,128]{1,0:T(1,128)}', space=vmem, size = 0x12000, scoped, tag = 'internal scratch']
  %s0 = inlined_call_operand.vmem [shape: f32[2,4,16], index: 0, kind: input, shape index: {}]
  %s1 = inlined_call_operand.vmem [shape: f32[4,1], index: 1, kind: input, shape index: {}]
  %s2 = inlined_call_operand.vmem [shape: f32[4,1], index: 2, kind: input, shape index: {}]
  %s3 = inlined_call_operand.vmem [shape: f32[4,4], index: 3, kind: input, shape index: {}]
  %s4 = inlined_call_operand.vmem [shape: f32[2,4,16], index: 4, kind: output, shape index: {0}]
  %s5 = inlined_call_operand.vmem [shape: f32[2,1,4,2], index: 5, kind: output, shape index: {1}]
  %6 = xla_tuple %s4, %s5
  %s7 = sld [smem:[#allocation0]]
  $region57: #{convblock_forward.6} parent=0
    _
  %s9 = ssub.s32 1, %s7
  %s10 = scalar_select 0, %s9, %s7
  loop: start=0, step=1, limit=4
  $region2: #{convblock_forward.6} parent=0 // loop_pre_header
    _
  $region3: #{convblock_forward.6} parent=0 // loop_header
    %s12 = sphi 0, %s16
    %p13 = scmp.ge.s32.totalorder %s12, 4
    %s19 = sphi 0, %s31
    %s20 = sphi 0, %s27
    %s21 = sphi 0, %s19
    %s22 = sphi 0, %s20
    %s23 = sphi 0, %s21
    %s24 = sphi 0, %s22
    %s36 = sphi 0, %s38
    %s39 = sphi 0, %s36
    %s40 = sphi 0, %s39
    %s56 = sphi 0, %s40
    %s60 = sphi 0, %s60
    %s62 = sphi 0, %s60
    %s63 = sphi 0, %s62
    %s77 = sphi 0, %s63
    %s81 = sphi 0, %s81
    %s83 = sphi 0, %s81
    %s84 = sphi 0, %s83
    %s98 = sphi 0, %s84
    %s102 = sphi 0, %s102
    %s104 = sphi 0, %s102
    %s105 = sphi 0, %s104
    %s119 = sphi 0, %s105
    %s127 = sphi 0, %s129
    %s130 = sphi 0, %s127
    %s131 = sphi 0, %s130
    %s147 = sphi 0, %s131
    %s155 = sphi 0, %s157
    %s158 = sphi 0, %s155
    %s159 = sphi 0, %s158
    %s175 = sphi 0, %s159
  $region4: #{convblock_forward.6} parent=0 // loop_header_branch
    %15 = sbr.rel (%p13) target = $region8
  $region5: #{convblock_forward.6} parent=0 // loop_body
    %s17 = ssub.s32 %s12, 1
    %s18 = ssub.s32 %s12, 2
    %s25 = sadd.s32 1, %s20
    %p26 = scmp.ge.s32.totalorder %s25, 1
    %s27 = scalar_select %p26, 0, %s25
    %s28 = sadd.s32 1, %s19
    %s29 = scalar_select %p26, %s28, %s19
    %p30 = scmp.ge.s32.totalorder %s29, 2
    %s31 = scalar_select %p30, 0, %s29
    %s32 = ssub.s32 %s19, %s31
    %s33 = ssub.s32 %s20, %s27
    %s34 = sor.u32 %s32, %s33
    %p35 = scmp.eq.s32.totalorder %s34, 0
    %s37 = sadd.s32 %s36, 1
    %s38 = scalar_select %p35, %s36, %s37
    %p41 = pneg %p35
    %p42 = scmp.eq.s32.totalorder %s12, 1
    %p43 = por %p41, %p42
    %p44 = scmp.ne.s32.totalorder %s36, %s39
    %p45 = scmp.eq.s32.totalorder %s12, 0
    %p46 = por %p44, %p45
    %p47 = scmp.ne.s32.totalorder %s36, %s39
    %p48 = scmp.eq.s32.totalorder %s17, 1
    %p49 = por %p47, %p48
    %p50 = scmp.ne.s32.totalorder %s39, %s40
    %p51 = scmp.eq.s32.totalorder %s17, 0
    %p52 = por %p50, %p51
    %p53 = scmp.ne.s32.totalorder %s39, %s40
    %p54 = scmp.eq.s32.totalorder %s18, 1
    %p55 = por %p53, %p54
    %p57 = scmp.ne.s32.totalorder %s40, %s56
    %p58 = scmp.eq.s32.totalorder %s18, 0
    %p59 = por %p57, %p58
    %s61 = sadd.s32 %s60, 1
    %p64 = scmp.eq.s32.totalorder %s12, 1
    %p65 = scmp.ne.s32.totalorder %s60, %s62
    %p66 = scmp.eq.s32.totalorder %s12, 0
    %p67 = por %p65, %p66
    %p68 = scmp.ne.s32.totalorder %s60, %s62
    %p69 = scmp.eq.s32.totalorder %s17, 1
    %p70 = por %p68, %p69
    %p71 = scmp.ne.s32.totalorder %s62, %s63
    %p72 = scmp.eq.s32.totalorder %s17, 0
    %p73 = por %p71, %p72
    %p74 = scmp.ne.s32.totalorder %s62, %s63
    %p75 = scmp.eq.s32.totalorder %s18, 1
    %p76 = por %p74, %p75
    %p78 = scmp.ne.s32.totalorder %s63, %s77
    %p79 = scmp.eq.s32.totalorder %s18, 0
    %p80 = por %p78, %p79
    %s82 = sadd.s32 %s81, 1
    %p85 = scmp.eq.s32.totalorder %s12, 1
    %p86 = scmp.ne.s32.totalorder %s81, %s83
    %p87 = scmp.eq.s32.totalorder %s12, 0
    %p88 = por %p86, %p87
    %p89 = scmp.ne.s32.totalorder %s81, %s83
    %p90 = scmp.eq.s32.totalorder %s17, 1
    %p91 = por %p89, %p90
    %p92 = scmp.ne.s32.totalorder %s83, %s84
    %p93 = scmp.eq.s32.totalorder %s17, 0
    %p94 = por %p92, %p93
    %p95 = scmp.ne.s32.totalorder %s83, %s84
    %p96 = scmp.eq.s32.totalorder %s18, 1
    %p97 = por %p95, %p96
    %p99 = scmp.ne.s32.totalorder %s84, %s98
    %p100 = scmp.eq.s32.totalorder %s18, 0
    %p101 = por %p99, %p100
    %s103 = sadd.s32 %s102, 1
    %p106 = scmp.eq.s32.totalorder %s12, 1
    %p107 = scmp.ne.s32.totalorder %s102, %s104
    %p108 = scmp.eq.s32.totalorder %s12, 0
    %p109 = por %p107, %p108
    %p110 = scmp.ne.s32.totalorder %s102, %s104
    %p111 = scmp.eq.s32.totalorder %s17, 1
    %p112 = por %p110, %p111
    %p113 = scmp.ne.s32.totalorder %s104, %s105
    %p114 = scmp.eq.s32.totalorder %s17, 0
    %p115 = por %p113, %p114
    %p116 = scmp.ne.s32.totalorder %s104, %s105
    %p117 = scmp.eq.s32.totalorder %s18, 1
    %p118 = por %p116, %p117
    %p120 = scmp.ne.s32.totalorder %s105, %s119
    %p121 = scmp.eq.s32.totalorder %s18, 0
    %p122 = por %p120, %p121
    %s123 = ssub.s32 %s19, %s31
    %s124 = ssub.s32 %s20, %s27
    %s125 = sor.u32 %s123, %s124
    %p126 = scmp.eq.s32.totalorder %s125, 0
    %s128 = sadd.s32 %s127, 1
    %s129 = scalar_select %p126, %s127, %s128
    %p132 = pneg %p126
    %p133 = scmp.eq.s32.totalorder %s12, 1
    %p134 = por %p132, %p133
    %p135 = scmp.ne.s32.totalorder %s127, %s130
    %p136 = scmp.eq.s32.totalorder %s12, 0
    %p137 = por %p135, %p136
    %p138 = scmp.ne.s32.totalorder %s127, %s130
    %p139 = scmp.eq.s32.totalorder %s17, 1
    %p140 = por %p138, %p139
    %p141 = scmp.ne.s32.totalorder %s130, %s131
    %p142 = scmp.eq.s32.totalorder %s17, 0
    %p143 = por %p141, %p142
    %p144 = scmp.ne.s32.totalorder %s130, %s131
    %p145 = scmp.eq.s32.totalorder %s18, 1
    %p146 = por %p144, %p145
    %p148 = scmp.ne.s32.totalorder %s131, %s147
    %p149 = scmp.eq.s32.totalorder %s18, 0
    %p150 = por %p148, %p149
    %s151 = ssub.s32 %s19, %s31
    %s152 = ssub.s32 %s20, %s27
    %s153 = sor.u32 %s151, %s152
    %p154 = scmp.eq.s32.totalorder %s153, 0
    %s156 = sadd.s32 %s155, 1
    %s157 = scalar_select %p154, %s155, %s156
    %p160 = pneg %p154
    %p161 = scmp.eq.s32.totalorder %s12, 1
    %p162 = por %p160, %p161
    %p163 = scmp.ne.s32.totalorder %s155, %s158
    %p164 = scmp.eq.s32.totalorder %s12, 0
    %p165 = por %p163, %p164
    %p166 = scmp.ne.s32.totalorder %s155, %s158
    %p167 = scmp.eq.s32.totalorder %s17, 1
    %p168 = por %p166, %p167
    %p169 = scmp.ne.s32.totalorder %s158, %s159
    %p170 = scmp.eq.s32.totalorder %s17, 0
    %p171 = por %p169, %p170
    %p172 = scmp.ne.s32.totalorder %s158, %s159
    %p173 = scmp.eq.s32.totalorder %s18, 1
    %p174 = por %p172, %p173
    %p176 = scmp.ne.s32.totalorder %s159, %s175
    %p177 = scmp.eq.s32.totalorder %s18, 0
    %p178 = por %p176, %p177
    %p179 = scmp.le.s32.totalorder 1, %s12
    %p180 = scmp.lt.s32.totalorder %s12, 3
    %p181 = pnand %p179, %p180
    %p182 = pneg %p181
    // Predicated region
    $region9: #{convblock_forward.6} parent=5 // pred_check
      _
    $region10: #{convblock_forward.6} parent=5 // pred_check_branch
      %184 = sbr.rel (%p181) target = $region12
    $region11: #{convblock_forward.6} parent=5 // pred_region
      %s185 = ssub.s32 %s12, 1
      // Predicated region
      $region13: #{convblock_forward.6} parent=11 // pred_check
        %p186 = pneg %p73
      $region14: #{convblock_forward.6} parent=11 // pred_check_branch
        %188 = sbr.rel (%p186) target = $region16
      $region15: #{convblock_forward.6} parent=11 // pred_region
        _
      $region16: #{convblock_forward.6} parent=11 // pred_fallthru
        _
      // Predicated region
      $region17: #{convblock_forward.6} parent=11 // pred_check
        %p189 = pneg %p94
      $region18: #{convblock_forward.6} parent=11 // pred_check_branch
        %191 = sbr.rel (%p189) target = $region20
      $region19: #{convblock_forward.6} parent=11 // pred_region
        _
      $region20: #{convblock_forward.6} parent=11 // pred_fallthru
        _
      // Predicated region
      $region21: #{convblock_forward.6} parent=11 // pred_check
        %p192 = pneg %p115
      $region22: #{convblock_forward.6} parent=11 // pred_check_branch
        %194 = sbr.rel (%p192) target = $region24
      $region23: #{convblock_forward.6} parent=11 // pred_region
        _
      $region24: #{convblock_forward.6} parent=11 // pred_fallthru
        _
    $region12: #{convblock_forward.6} parent=5 // pred_fallthru
      _
    %p195 = scmp.lt.s32.totalorder %s12, 2
    // Predicated region
    $region25: #{convblock_forward.6} parent=5 // pred_check
      %p196 = pneg %p195
    $region26: #{convblock_forward.6} parent=5 // pred_check_branch
      %198 = sbr.rel (%p196) target = $region28
    $region27: #{convblock_forward.6} parent=5 // pred_region
      // Predicated region
      $region29: #{convblock_forward.6} parent=27 // pred_check
        %p199 = pneg %p46
      $region30: #{convblock_forward.6} parent=27 // pred_check_branch
        %201 = sbr.rel (%p199) target = $region32
      $region31: #{convblock_forward.6} parent=27 // pred_region
        %p202 = scmp.lt.s32.totalorder %s19, 1
        %s203 = scalar_select %p202, %s19, 1
        %p204 = scmp.lt.s32.totalorder %s20, 0
        %s205 = scalar_select %p204, %s20, 0
        %s206 = sadd.s32 %s205, %s203
        %s207 = smul.addr %s206, 4
        %s208 = scalar_lea.vmem %s0, %s207
      $region32: #{convblock_forward.6} parent=27 // pred_fallthru
        _
    $region28: #{convblock_forward.6} parent=5 // pred_fallthru
      _
    %p209 = scmp.le.s32.totalorder 1, %s12
    %p210 = scmp.lt.s32.totalorder %s12, 3
    %p211 = pnand %p209, %p210
    %p212 = pneg %p211
    // Predicated region
    $region33: #{convblock_forward.6} parent=5 // pred_check
      _
    $region34: #{convblock_forward.6} parent=5 // pred_check_branch
      %214 = sbr.rel (%p211) target = $region36
    $region35: #{convblock_forward.6} parent=5 // pred_region
      %s215 = ssub.s32 %s12, 1
      %p216 = scmp.lt.s32.totalorder %s21, 1
      %s217 = scalar_select %p216, %s21, 1
      %p218 = scmp.lt.s32.totalorder %s22, 0
      %s219 = scalar_select %p218, %s22, 0
      %s220 = sadd.s32 %s219, %s217
      %s221 = smul.addr %s220, 4
      %s222 = scalar_lea.vmem %s0, %s221
      %p223 = pneg %p52
      %p224 = pneg %p49
      %p225 = pneg %p73
      %p226 = pneg %p70
      %p227 = pneg %p94
      %p228 = pneg %p91
      %p229 = pneg %p115
      %p230 = pneg %p112
      %p231 = pneg %p143
      %p232 = pneg %p140
      %p233 = scmp.lt.s32.totalorder %s21, 1
      %s234 = scalar_select %p233, %s21, 1
      %p235 = scmp.lt.s32.totalorder %s22, 0
      %s236 = scalar_select %p235, %s22, 0
      %s237 = sadd.s32 %s236, %s234
      %s238 = smul.addr %s237, 4
      %s239 = scalar_lea.vmem %s4, %s238
      %p240 = pneg %p171
      %p241 = pneg %p168
      %p242 = scmp.lt.s32.totalorder %s21, 1
      %s243 = scalar_select %p242, %s21, 1
      %p244 = scmp.lt.s32.totalorder %s22, 0
      %s245 = scalar_select %p244, %s22, 0
      %s246 = sadd.s32 %s245, %s243
      %s247 = smul.addr %s246, 4
      %s248 = scalar_lea.vmem %s5, %s247
      %p249 = scmp.lt.s32.totalorder %s21, 1
      %s250 = scalar_select %p249, %s21, 1
      %p251 = scmp.lt.s32.totalorder %s22, 0
      %s252 = scalar_select %p251, %s22, 0
      %s253 = sadd.s32 %s252, %s250
      %s254 = smul.addr %s253, 4
      %s255 = scalar_lea.vmem %s0, %s254
      %p256 = scmp.lt.s32.totalorder %s21, 1
      %s257 = scalar_select %p256, %s21, 1
      %p258 = scmp.lt.s32.totalorder %s22, 0
      %s259 = scalar_select %p258, %s22, 0
      %s260 = sadd.s32 %s259, %s257
      %s261 = smul.addr %s260, 4
      %s262 = scalar_lea.vmem %s4, %s261
      %p263 = scmp.lt.s32.totalorder %s21, 1
      %s264 = scalar_select %p263, %s21, 1
      %p265 = scmp.lt.s32.totalorder %s22, 0
      %s266 = scalar_select %p265, %s22, 0
      %s267 = sadd.s32 %s266, %s264
      %s268 = smul.addr %s267, 4
      %s269 = scalar_lea.vmem %s5, %s268
      %v270 = vld [vmem:[%s255] sm:$0xf]
      %v271 = vld [vmem:[%s3] sm:$0xf]
      %vm272 = vcmask 31744
      %v274 = vsel %vm272, %v271, 0
      %vm276 = vcmask 1043456
      %v278 = vsel %vm276, %v270, 0
      %280 = vmatprep.subr.mxu0 0.0
      %281 = vmatpush1.msra.mxu0 %v278
      %282 = vmatprep.subr.mxu0 0.0
      %283 = vmatpush1.msra.mxu0 0.0
      %284 = vmatprep.subr.mxu0 0.0
      %285 = vmatpush1.msra.mxu0 0.0
      %286 = vmatprep.subr.mxu0 0.0
      %287 = vmatpush1.msra.mxu0 0.0
      %288 = vmatprep.subr.mxu0 0.0
      %289 = vmatpush1.msra.mxu0 0.0
      %290 = vmatprep.subr.mxu0 0.0
      %291 = vmatpush1.msra.mxu0 0.0
      %292 = vmatprep.subr.mxu0 0.0
      %293 = vmatpush1.msra.mxu0 0.0
      %294 = vmatprep.subr.mxu0 0.0
      %295 = vmatpush1.msra.mxu0 0.0
      %296 = vmatprep.subr.mxu0 0.0
      %297 = vmatpush1.msra.mxu0 0.0
      %298 = vmatprep.subr.mxu0 0.0
      %299 = vmatpush1.msra.mxu0 0.0
      %300 = vmatprep.subr.mxu0 0.0
      %301 = vmatpush1.msra.mxu0 0.0
      %302 = vmatprep.subr.mxu0 0.0
      %303 = vmatpush1.msra.mxu0 0.0
      %304 = vmatprep.subr.mxu0 0.0
      %305 = vmatpush1.msra.mxu0 0.0
      %306 = vmatprep.subr.mxu0 0.0
      %307 = vmatpush1.msra.mxu0 0.0
      %308 = vmatprep.subr.mxu0 0.0
      %309 = vmatpush1.msra.mxu0 0.0
      %310 = vmatprep.subr.mxu0 0.0
      %311 = vmatpush1.msra.mxu0 0.0
      %312 = vmatprep.subr.mxu0 0.0
      %313 = vmatpush1.msra.mxu0 0.0
      %314 = vmatprep.subr.mxu0 0.0
      %315 = vmatpush1.msra.mxu0 0.0
      %316 = vmatprep.subr.mxu0 0.0
      %317 = vmatpush1.msra.mxu0 0.0
      %318 = vmatprep.subr.mxu0 0.0
      %319 = vmatpush1.msra.mxu0 0.0
      %320 = vmatprep.subr.mxu0 0.0
      %321 = vmatpush1.msra.mxu0 0.0
      %322 = vmatprep.subr.mxu0 0.0
      %323 = vmatpush1.msra.mxu0 0.0
      %324 = vmatprep.subr.mxu0 0.0
      %325 = vmatpush1.msra.mxu0 0.0
      %326 = vmatprep.subr.mxu0 0.0
      %327 = vmatpush1.msra.mxu0 0.0
      %328 = vmatprep.subr.mxu0 0.0
      %329 = vmatpush1.msra.mxu0 0.0
      %330 = vmatprep.subr.mxu0 0.0
      %331 = vmatpush1.msra.mxu0 0.0
      %332 = vmatprep.subr.mxu0 0.0
      %333 = vmatpush1.msra.mxu0 0.0
      %334 = vmatprep.subr.mxu0 0.0
      %335 = vmatpush1.msra.mxu0 0.0
      %336 = vmatprep.subr.mxu0 0.0
      %337 = vmatpush1.msra.mxu0 0.0
      %338 = vmatprep.subr.mxu0 0.0
      %339 = vmatpush1.msra.mxu0 0.0
      %340 = vmatprep.subr.mxu0 0.0
      %341 = vmatpush1.msra.mxu0 0.0
      %342 = vmatprep.subr.mxu0 0.0
      %343 = vmatpush1.msra.mxu0 0.0
      %344 = vmatprep.mubr.f32.mxu0 0.0
      %345 = vmatmul.mubr.f32.gmra.mrb[0].mxu0 %v274
      %v346 = vpop.f32.mrb[0].mxu0
      %v347 = vadd.f32 0.0, %v346
      %v348 = vpop.f32.mrb[0].mxu0
      %349 = vdwg.mxu0
      %vm350 = vcmask 125952
      %351 = vst.msk [vmem:[%s262] sm:$0xf] %vm350, %v347
      %v352 = vsel %vm350, %v347, 0.0
      %353 = vadd.xlane.f32.xlu0 %v352
      %v354 = vpop.xlane.xlu0 %353
      %v355 = vmul.f32 %v347, %v347
      %v356 = vsel %vm350, %v355, 0.0
      %357 = vadd.xlane.f32.xlu0 %v356
      %v358 = vpop.xlane.xlu0 %357
      %vm359 = vcmask 7168
      %v360 = vsel %vm359, %v354, %v358
      %vm361 = vcmask 11264
      %362 = vst.msk [vmem:[%s269] sm:$0xf] %vm361, %v360
      %p363 = scmp.lt.s32.totalorder %s21, 1
      %s364 = scalar_select %p363, %s21, 1
      %p365 = scmp.lt.s32.totalorder %s22, 0
      %s366 = scalar_select %p365, %s22, 0
      %s367 = sadd.s32 %s366, %s364
      %s368 = smul.addr %s367, 4
      %s369 = scalar_lea.vmem %s4, %s368
      %p370 = scmp.lt.s32.totalorder %s21, 1
      %s371 = scalar_select %p370, %s21, 1
      %p372 = scmp.lt.s32.totalorder %s22, 0
      %s373 = scalar_select %p372, %s22, 0
      %s374 = sadd.s32 %s373, %s371
      %s375 = smul.addr %s374, 4
      %s376 = scalar_lea.vmem %s5, %s375
      // Predicated region
      $region37: #{convblock_forward.6} parent=35 // pred_check
        %p377 = pneg %p140
      $region38: #{convblock_forward.6} parent=35 // pred_check_branch
        %379 = sbr.rel (%p377) target = $region40
      $region39: #{convblock_forward.6} parent=35 // pred_region
        _
      $region40: #{convblock_forward.6} parent=35 // pred_fallthru
        _
      // Predicated region
      $region41: #{convblock_forward.6} parent=35 // pred_check
        %p380 = pneg %p168
      $region42: #{convblock_forward.6} parent=35 // pred_check_branch
        %382 = sbr.rel (%p380) target = $region44
      $region43: #{convblock_forward.6} parent=35 // pred_region
        _
      $region44: #{convblock_forward.6} parent=35 // pred_fallthru
        _
    $region36: #{convblock_forward.6} parent=5 // pred_fallthru
      _
    %p383 = scmp.le.s32.totalorder 2, %s12
    // Predicated region
    $region45: #{convblock_forward.6} parent=5 // pred_check
      %p384 = pneg %p383
    $region46: #{convblock_forward.6} parent=5 // pred_check_branch
      %386 = sbr.rel (%p384) target = $region48
    $region47: #{convblock_forward.6} parent=5 // pred_region
      %s387 = ssub.s32 %s12, 2
      // Predicated region
      $region49: #{convblock_forward.6} parent=47 // pred_check
        %p388 = pneg %p146
      $region50: #{convblock_forward.6} parent=47 // pred_check_branch
        %390 = sbr.rel (%p388) target = $region52
      $region51: #{convblock_forward.6} parent=47 // pred_region
        %p391 = scmp.lt.s32.totalorder %s23, 1
        %s392 = scalar_select %p391, %s23, 1
        %p393 = scmp.lt.s32.totalorder %s24, 0
        %s394 = scalar_select %p393, %s24, 0
        %s395 = sadd.s32 %s394, %s392
        %s396 = smul.addr %s395, 4
        %s397 = scalar_lea.vmem %s4, %s396
      $region52: #{convblock_forward.6} parent=47 // pred_fallthru
        _
      // Predicated region
      $region53: #{convblock_forward.6} parent=47 // pred_check
        %p398 = pneg %p174
      $region54: #{convblock_forward.6} parent=47 // pred_check_branch
        %400 = sbr.rel (%p398) target = $region56
      $region55: #{convblock_forward.6} parent=47 // pred_region
        %p401 = scmp.lt.s32.totalorder %s23, 1
        %s402 = scalar_select %p401, %s23, 1
        %p403 = scmp.lt.s32.totalorder %s24, 0
        %s404 = scalar_select %p403, %s24, 0
        %s405 = sadd.s32 %s404, %s402
        %s406 = smul.addr %s405, 4
        %s407 = scalar_lea.vmem %s5, %s406
      $region56: #{convblock_forward.6} parent=47 // pred_fallthru
        _
    $region48: #{convblock_forward.6} parent=5 // pred_fallthru
      _
  $region6: #{convblock_forward.6} parent=0 // loop_footer
    %s16 = sadd.s32 1, %s12
  $region7: #{convblock_forward.6} parent=0 // loop_footer_branch
    %11 = sbr.rel target = $region3
  $region8: #{convblock_forward.6} parent=0 // loop_exit
    _

// kernel: convblock_forward.9
$region0: #{convblock_forward.9}
  #allocation0 [shape = 'u32[]', space=smem, size = 0x4, offset = 0x4, fixed_abs, tag = 'smem constant byte address 0x4 - core index']
  #allocation1 [shape = 'u32[144,128]{1,0:T(1,128)}', space=vmem, size = 0x12000, scoped, tag = 'internal scratch']
  %s0 = inlined_call_operand.vmem [shape: f32[2,4,16], index: 0, kind: input, shape index: {}]
  %s1 = inlined_call_operand.vmem [shape: f32[4,1], index: 1, kind: input, shape index: {}]
  %s2 = inlined_call_operand.vmem [shape: f32[4,1], index: 2, kind: input, shape index: {}]
  %s3 = inlined_call_operand.vmem [shape: f32[4,3], index: 3, kind: input, shape index: {}]
  %s4 = inlined_call_operand.hbm [shape: f32[2,4,16], index: 4, kind: output, shape index: {0}]
  %s5 = inlined_call_operand.vmem [shape: f32[2,4,16], index: 5, kind: output, shape index: {1}]
  %s6 = inlined_call_operand.vmem [shape: f32[2,1,4,2], index: 6, kind: output, shape index: {2}]
  %7 = xla_tuple %s4, %s5, %s6
  %s8 = sld [smem:[#allocation0]]
  $region65: #{convblock_forward.9} parent=0
    _
  %s10 = ssub.s32 1, %s8
  %s11 = scalar_select 0, %s10, %s8
  $region1: #{convblock_forward.9} parent=0
    #allocation2 [shape = 'u8[4096]{0}', space=vmem, size = 0x1000, scoped, tag = 'output window, operand 0']
    #allocation3 [shape = 's32[2]{0}', space=sflag, size = 0x8, scoped, tag = 'scoped memory for convblock_forward.9']
    %12 = vsyncpa [#allocation3], 0
    %s13 = scalar_lea.sflag [#allocation3], 1
    %14 = vsyncpa %s13, 0
    loop: start=0, step=1, limit=4
    $region2: #{convblock_forward.9} parent=1 // loop_pre_header
      _
    $region3: #{convblock_forward.9} parent=1 // loop_header
      %s16 = sphi 0, %s20
      %p17 = scmp.ge.s32.totalorder %s16, 4
      %s23 = sphi 0, %s35
      %s24 = sphi 0, %s31
      %s25 = sphi 0, %s23
      %s26 = sphi 0, %s24
      %s27 = sphi 0, %s25
      %s28 = sphi 0, %s26
      %s40 = sphi 0, %s42
      %s43 = sphi 0, %s40
      %s44 = sphi 0, %s43
      %s60 = sphi 0, %s44
      %s64 = sphi 0, %s64
      %s66 = sphi 0, %s64
      %s67 = sphi 0, %s66
      %s81 = sphi 0, %s67
      %s85 = sphi 0, %s85
      %s87 = sphi 0, %s85
      %s88 = sphi 0, %s87
      %s102 = sphi 0, %s88
      %s106 = sphi 0, %s106
      %s108 = sphi 0, %s106
      %s109 = sphi 0, %s108
      %s123 = sphi 0, %s109
      %s131 = sphi 0, %s133
      %s134 = sphi 0, %s131
      %s135 = sphi 0, %s134
      %s151 = sphi 0, %s135
      %s159 = sphi 0, %s161
      %s162 = sphi 0, %s159
      %s163 = sphi 0, %s162
      %s179 = sphi 0, %s163
      %s187 = sphi 0, %s189
      %s190 = sphi 0, %s187
      %s191 = sphi 0, %s190
      %s207 = sphi 0, %s191
    $region4: #{convblock_forward.9} parent=1 // loop_header_branch
      %19 = sbr.rel (%p17) target = $region8
    $region5: #{convblock_forward.9} parent=1 // loop_body
      %s21 = ssub.s32 %s16, 1
      %s22 = ssub.s32 %s16, 2
      %s29 = sadd.s32 1, %s24
      %p30 = scmp.ge.s32.totalorder %s29, 1
      %s31 = scalar_select %p30, 0, %s29
      %s32 = sadd.s32 1, %s23
      %s33 = scalar_select %p30, %s32, %s23
      %p34 = scmp.ge.s32.totalorder %s33, 2
      %s35 = scalar_select %p34, 0, %s33
      %s36 = ssub.s32 %s23, %s35
      %s37 = ssub.s32 %s24, %s31
      %s38 = sor.u32 %s36, %s37
      %p39 = scmp.eq.s32.totalorder %s38, 0
      %s41 = sadd.s32 %s40, 1
      %s42 = scalar_select %p39, %s40, %s41
      %p45 = pneg %p39
      %p46 = scmp.eq.s32.totalorder %s16, 1
      %p47 = por %p45, %p46
      %p48 = scmp.ne.s32.totalorder %s40, %s43
      %p49 = scmp.eq.s32.totalorder %s16, 0
      %p50 = por %p48, %p49
      %p51 = scmp.ne.s32.totalorder %s40, %s43
      %p52 = scmp.eq.s32.totalorder %s21, 1
      %p53 = por %p51, %p52
      %p54 = scmp.ne.s32.totalorder %s43, %s44
      %p55 = scmp.eq.s32.totalorder %s21, 0
      %p56 = por %p54, %p55
      %p57 = scmp.ne.s32.totalorder %s43, %s44
      %p58 = scmp.eq.s32.totalorder %s22, 1
      %p59 = por %p57, %p58
      %p61 = scmp.ne.s32.totalorder %s44, %s60
      %p62 = scmp.eq.s32.totalorder %s22, 0
      %p63 = por %p61, %p62
      %s65 = sadd.s32 %s64, 1
      %p68 = scmp.eq.s32.totalorder %s16, 1
      %p69 = scmp.ne.s32.totalorder %s64, %s66
      %p70 = scmp.eq.s32.totalorder %s16, 0
      %p71 = por %p69, %p70
      %p72 = scmp.ne.s32.totalorder %s64, %s66
      %p73 = scmp.eq.s32.totalorder %s21, 1
      %p74 = por %p72, %p73
      %p75 = scmp.ne.s32.totalorder %s66, %s67
      %p76 = scmp.eq.s32.totalorder %s21, 0
      %p77 = por %p75, %p76
      %p78 = scmp.ne.s32.totalorder %s66, %s67
      %p79 = scmp.eq.s32.totalorder %s22, 1
      %p80 = por %p78, %p79
      %p82 = scmp.ne.s32.totalorder %s67, %s81
      %p83 = scmp.eq.s32.totalorder %s22, 0
      %p84 = por %p82, %p83
      %s86 = sadd.s32 %s85, 1
      %p89 = scmp.eq.s32.totalorder %s16, 1
      %p90 = scmp.ne.s32.totalorder %s85, %s87
      %p91 = scmp.eq.s32.totalorder %s16, 0
      %p92 = por %p90, %p91
      %p93 = scmp.ne.s32.totalorder %s85, %s87
      %p94 = scmp.eq.s32.totalorder %s21, 1
      %p95 = por %p93, %p94
      %p96 = scmp.ne.s32.totalorder %s87, %s88
      %p97 = scmp.eq.s32.totalorder %s21, 0
      %p98 = por %p96, %p97
      %p99 = scmp.ne.s32.totalorder %s87, %s88
      %p100 = scmp.eq.s32.totalorder %s22, 1
      %p101 = por %p99, %p100
      %p103 = scmp.ne.s32.totalorder %s88, %s102
      %p104 = scmp.eq.s32.totalorder %s22, 0
      %p105 = por %p103, %p104
      %s107 = sadd.s32 %s106, 1
      %p110 = scmp.eq.s32.totalorder %s16, 1
      %p111 = scmp.ne.s32.totalorder %s106, %s108
      %p112 = scmp.eq.s32.totalorder %s16, 0
      %p113 = por %p111, %p112
      %p114 = scmp.ne.s32.totalorder %s106, %s108
      %p115 = scmp.eq.s32.totalorder %s21, 1
      %p116 = por %p114, %p115
      %p117 = scmp.ne.s32.totalorder %s108, %s109
      %p118 = scmp.eq.s32.totalorder %s21, 0
      %p119 = por %p117, %p118
      %p120 = scmp.ne.s32.totalorder %s108, %s109
      %p121 = scmp.eq.s32.totalorder %s22, 1
      %p122 = por %p120, %p121
      %p124 = scmp.ne.s32.totalorder %s109, %s123
      %p125 = scmp.eq.s32.totalorder %s22, 0
      %p126 = por %p124, %p125
      %s127 = ssub.s32 %s23, %s35
      %s128 = ssub.s32 %s24, %s31
      %s129 = sor.u32 %s127, %s128
      %p130 = scmp.eq.s32.totalorder %s129, 0
      %s132 = sadd.s32 %s131, 1
      %s133 = scalar_select %p130, %s131, %s132
      %p136 = pneg %p130
      %p137 = scmp.eq.s32.totalorder %s16, 1
      %p138 = por %p136, %p137
      %p139 = scmp.ne.s32.totalorder %s131, %s134
      %p140 = scmp.eq.s32.totalorder %s16, 0
      %p141 = por %p139, %p140
      %p142 = scmp.ne.s32.totalorder %s131, %s134
      %p143 = scmp.eq.s32.totalorder %s21, 1
      %p144 = por %p142, %p143
      %p145 = scmp.ne.s32.totalorder %s134, %s135
      %p146 = scmp.eq.s32.totalorder %s21, 0
      %p147 = por %p145, %p146
      %p148 = scmp.ne.s32.totalorder %s134, %s135
      %p149 = scmp.eq.s32.totalorder %s22, 1
      %p150 = por %p148, %p149
      %p152 = scmp.ne.s32.totalorder %s135, %s151
      %p153 = scmp.eq.s32.totalorder %s22, 0
      %p154 = por %p152, %p153
      %s155 = ssub.s32 %s23, %s35
      %s156 = ssub.s32 %s24, %s31
      %s157 = sor.u32 %s155, %s156
      %p158 = scmp.eq.s32.totalorder %s157, 0
      %s160 = sadd.s32 %s159, 1
      %s161 = scalar_select %p158, %s159, %s160
      %p164 = pneg %p158
      %p165 = scmp.eq.s32.totalorder %s16, 1
      %p166 = por %p164, %p165
      %p167 = scmp.ne.s32.totalorder %s159, %s162
      %p168 = scmp.eq.s32.totalorder %s16, 0
      %p169 = por %p167, %p168
      %p170 = scmp.ne.s32.totalorder %s159, %s162
      %p171 = scmp.eq.s32.totalorder %s21, 1
      %p172 = por %p170, %p171
      %p173 = scmp.ne.s32.totalorder %s162, %s163
      %p174 = scmp.eq.s32.totalorder %s21, 0
      %p175 = por %p173, %p174
      %p176 = scmp.ne.s32.totalorder %s162, %s163
      %p177 = scmp.eq.s32.totalorder %s22, 1
      %p178 = por %p176, %p177
      %p180 = scmp.ne.s32.totalorder %s163, %s179
      %p181 = scmp.eq.s32.totalorder %s22, 0
      %p182 = por %p180, %p181
      %s183 = ssub.s32 %s23, %s35
      %s184 = ssub.s32 %s24, %s31
      %s185 = sor.u32 %s183, %s184
      %p186 = scmp.eq.s32.totalorder %s185, 0
      %s188 = sadd.s32 %s187, 1
      %s189 = scalar_select %p186, %s187, %s188
      %p192 = pneg %p186
      %p193 = scmp.eq.s32.totalorder %s16, 1
      %p194 = por %p192, %p193
      %p195 = scmp.ne.s32.totalorder %s187, %s190
      %p196 = scmp.eq.s32.totalorder %s16, 0
      %p197 = por %p195, %p196
      %p198 = scmp.ne.s32.totalorder %s187, %s190
      %p199 = scmp.eq.s32.totalorder %s21, 1
      %p200 = por %p198, %p199
      %p201 = scmp.ne.s32.totalorder %s190, %s191
      %p202 = scmp.eq.s32.totalorder %s21, 0
      %p203 = por %p201, %p202
      %p204 = scmp.ne.s32.totalorder %s190, %s191
      %p205 = scmp.eq.s32.totalorder %s22, 1
      %p206 = por %p204, %p205
      %p208 = scmp.ne.s32.totalorder %s191, %s207
      %p209 = scmp.eq.s32.totalorder %s22, 0
      %p210 = por %p208, %p209
      %p211 = scmp.le.s32.totalorder 1, %s16
      %p212 = scmp.lt.s32.totalorder %s16, 3
      %p213 = pnand %p211, %p212
      %p214 = pneg %p213
      // Predicated region
      $region9: #{convblock_forward.9} parent=5 // pred_check
        _
      $region10: #{convblock_forward.9} parent=5 // pred_check_branch
        %216 = sbr.rel (%p213) target = $region12
      $region11: #{convblock_forward.9} parent=5 // pred_region
        %s217 = ssub.s32 %s16, 1
        // Predicated region
        $region13: #{convblock_forward.9} parent=11 // pred_check
          %p218 = pneg %p77
        $region14: #{convblock_forward.9} parent=11 // pred_check_branch
          %220 = sbr.rel (%p218) target = $region16
        $region15: #{convblock_forward.9} parent=11 // pred_region
          _
        $region16: #{convblock_forward.9} parent=11 // pred_fallthru
          _
        // Predicated region
        $region17: #{convblock_forward.9} parent=11 // pred_check
          %p221 = pneg %p98
        $region18: #{convblock_forward.9} parent=11 // pred_check_branch
          %223 = sbr.rel (%p221) target = $region20
        $region19: #{convblock_forward.9} parent=11 // pred_region
          _
        $region20: #{convblock_forward.9} parent=11 // pred_fallthru
          _
        // Predicated region
        $region21: #{convblock_forward.9} parent=11 // pred_check
          %p224 = pneg %p119
        $region22: #{convblock_forward.9} parent=11 // pred_check_branch
          %226 = sbr.rel (%p224) target = $region24
        $region23: #{convblock_forward.9} parent=11 // pred_region
          _
        $region24: #{convblock_forward.9} parent=11 // pred_fallthru
          _
      $region12: #{convblock_forward.9} parent=5 // pred_fallthru
        _
      %p227 = scmp.lt.s32.totalorder %s16, 2
      // Predicated region
      $region25: #{convblock_forward.9} parent=5 // pred_check
        %p228 = pneg %p227
      $region26: #{convblock_forward.9} parent=5 // pred_check_branch
        %230 = sbr.rel (%p228) target = $region28
      $region27: #{convblock_forward.9} parent=5 // pred_region
        // Predicated region
        $region29: #{convblock_forward.9} parent=27 // pred_check
          %p231 = pneg %p50
        $region30: #{convblock_forward.9} parent=27 // pred_check_branch
          %233 = sbr.rel (%p231) target = $region32
        $region31: #{convblock_forward.9} parent=27 // pred_region
          %p234 = scmp.lt.s32.totalorder %s23, 1
          %s235 = scalar_select %p234, %s23, 1
          %p236 = scmp.lt.s32.totalorder %s24, 0
          %s237 = scalar_select %p236, %s24, 0
          %s238 = sadd.s32 %s237, %s235
          %s239 = smul.addr %s238, 4
          %s240 = scalar_lea.vmem %s0, %s239
        $region32: #{convblock_forward.9} parent=27 // pred_fallthru
          _
      $region28: #{convblock_forward.9} parent=5 // pred_fallthru
        _
      %p241 = scmp.le.s32.totalorder 1, %s16
      %p242 = scmp.lt.s32.totalorder %s16, 3
      %p243 = pnand %p241, %p242
      %p244 = pneg %p243
      // Predicated region
      $region33: #{convblock_forward.9} parent=5 // pred_check
        _
      $region34: #{convblock_forward.9} parent=5 // pred_check_branch
        %246 = sbr.rel (%p243) target = $region36
      $region35: #{convblock_forward.9} parent=5 // pred_region
        %s247 = ssub.s32 %s16, 1
        %p248 = scmp.lt.s32.totalorder %s25, 1
        %s249 = scalar_select %p248, %s25, 1
        %p250 = scmp.lt.s32.totalorder %s26, 0
        %s251 = scalar_select %p250, %s26, 0
        %s252 = sadd.s32 %s251, %s249
        %s253 = smul.addr %s252, 4
        %s254 = scalar_lea.vmem %s0, %s253
        %p255 = pneg %p56
        %p256 = pneg %p53
        %p257 = pneg %p77
        %p258 = pneg %p74
        %p259 = pneg %p98
        %p260 = pneg %p95
        %p261 = pneg %p119
        %p262 = pneg %p116
        %p263 = pneg %p147
        %p264 = pneg %p144
        %s265 = sand.u32 %s134, 1
        %s266 = scalar_lea.sflag [#allocation3], %s265
        %s267 = sand.u32 %s134, 1
        %s268 = smul.addr %s267, 4
        %s269 = scalar_lea.vmem [#allocation2], %s268
        %p270 = pneg %p175
        %p271 = pneg %p172
        %p272 = scmp.lt.s32.totalorder %s25, 1
        %s273 = scalar_select %p272, %s25, 1
        %p274 = scmp.lt.s32.totalorder %s26, 0
        %s275 = scalar_select %p274, %s26, 0
        %s276 = sadd.s32 %s275, %s273
        %s277 = smul.addr %s276, 4
        %s278 = scalar_lea.vmem %s5, %s277
        %p279 = pneg %p203
        %p280 = pneg %p200
        %p281 = scmp.lt.s32.totalorder %s25, 1
        %s282 = scalar_select %p281, %s25, 1
        %p283 = scmp.lt.s32.totalorder %s26, 0
        %s284 = scalar_select %p283, %s26, 0
        %s285 = sadd.s32 %s284, %s282
        %s286 = smul.addr %s285, 4
        %s287 = scalar_lea.vmem %s6, %s286
        %p288 = scmp.lt.s32.totalorder %s25, 1
        %s289 = scalar_select %p288, %s25, 1
        %p290 = scmp.lt.s32.totalorder %s26, 0
        %s291 = scalar_select %p290, %s26, 0
        %s292 = sadd.s32 %s291, %s289
        %s293 = smul.addr %s292, 4
        %s294 = scalar_lea.vmem %s0, %s293
        %p295 = scmp.lt.s32.totalorder %s25, 1
        %s296 = scalar_select %p295, %s25, 1
        %p297 = scmp.lt.s32.totalorder %s26, 0
        %s298 = scalar_select %p297, %s26, 0
        %s299 = sadd.s32 %s298, %s296
        %s300 = smul.addr %s299, 4
        %s301 = scalar_lea.vmem %s5, %s300
        %p302 = scmp.lt.s32.totalorder %s25, 1
        %s303 = scalar_select %p302, %s25, 1
        %p304 = scmp.lt.s32.totalorder %s26, 0
        %s305 = scalar_select %p304, %s26, 0
        %s306 = sadd.s32 %s305, %s303
        %s307 = smul.addr %s306, 4
        %s308 = scalar_lea.vmem %s6, %s307
        %v309 = vld [vmem:[%s1] sm:$0xf]
        %v310 = vld [vmem:[%s2] sm:$0xf]
        %v311 = vld [vmem:[%s294] sm:$0xf]
        %313 = vset.pattern.permute.xlu0 0
        %314 = vperm.xlu0 %313, %v309
        %v315 = vpop.permute.xlu0 %314
        %v317 = vmul.f32 %v311, %v315
        %319 = vset.pattern.permute.xlu0 0
        %320 = vperm.xlu0 %319, %v310
        %v321 = vpop.permute.xlu0 %320
        %v323 = vadd.f32 %v317, %v321
        %v324 = vsub.f32 0.0, %v323
        %v325 = vmul.f32 %v324, 1.442695
        %v326 = vpow.pop %v325
        %v327 = vadd.f32 %v326, 1.0
        %v328 = vrcp.pop %v327
        %v329 = vmul.f32 1.0, %v328
        %v330 = vmul.f32 %v323, %v329
        %vm331 = vcmask 125952
        %332 = vst.msk [vmem:[%s269] sm:$0xf] %vm331, %v330
        %334 = vrot.lane.b32.xlu0 %v330, 1
        %v335 = vpop.permute.xlu0 %334
        %vm337 = vcmask 7168
        %v338 = vsel %vm337, 0.0, %v335
        %339 = vrot.lane.b32.xlu0 %v330, 127
        %v340 = vpop.permute.xlu0 %339
        %vm342 = vcmask 121856
        %v343 = vsel %vm342, %v340, 0.0
        %v344 = vld [vmem:[%s3] sm:$0xf]
        %346 = vset.pattern.permute.xlu0 0
        %347 = vperm.xlu0 %346, %v344
        %v348 = vpop.permute.xlu0 %347
        %v350 = vmul.f32 %v348, %v338
        %351 = vset.pattern.permute.xlu0 1
        %352 = vperm.xlu0 %351, %v344
        %v353 = vpop.permute.xlu0 %352
        %v355 = vmul.f32 %v353, %v330
        %v356 = vadd.f32 %v350, %v355
        %357 = vset.pattern.permute.xlu0 2
        %358 = vperm.xlu0 %357, %v344
        %v359 = vpop.permute.xlu0 %358
        %v361 = vmul.f32 %v359, %v343
        %v362 = vadd.f32 %v356, %v361
        %363 = vst.msk [vmem:[%s301] sm:$0xf] %vm331, %v362
        %v364 = vsel %vm331, %v362, 0.0
        %365 = vadd.xlane.f32.xlu0 %v364
        %v366 = vpop.xlane.xlu0 %365
        %v367 = vmul.f32 %v362, %v362
        %v368 = vsel %vm331, %v367, 0.0
        %369 = vadd.xlane.f32.xlu0 %v368
        %v370 = vpop.xlane.xlu0 %369
        %v371 = vsel %vm337, %v366, %v370
        %vm372 = vcmask 11264
        %373 = vst.msk [vmem:[%s308] sm:$0xf] %vm372, %v371
        %s374 = sand.u32 %s134, 1
        %s375 = scalar_lea.sflag [#allocation3], %s374
        %s376 = sand.u32 %s134, 1
        %s377 = smul.addr %s376, 4
        %s378 = scalar_lea.vmem [#allocation2], %s377
        %p379 = scmp.lt.s32.totalorder %s25, 1
        %s380 = scalar_select %p379, %s25, 1
        %p381 = scmp.lt.s32.totalorder %s26, 0
        %s382 = scalar_select %p381, %s26, 0
        %s383 = sadd.s32 %s382, %s380
        %s384 = smul.addr %s383, 4
        %s385 = scalar_lea.vmem %s5, %s384
        %p386 = scmp.lt.s32.totalorder %s25, 1
        %s387 = scalar_select %p386, %s25, 1
        %p388 = scmp.lt.s32.totalorder %s26, 0
        %s389 = scalar_select %p388, %s26, 0
        %s390 = sadd.s32 %s389, %s387
        %s391 = smul.addr %s390, 4
        %s392 = scalar_lea.vmem %s6, %s391
        // Predicated region
        $region37: #{convblock_forward.9} parent=35 // pred_check
          %p393 = pneg %p144
        $region38: #{convblock_forward.9} parent=35 // pred_check_branch
          %395 = sbr.rel (%p393) target = $region40
        $region39: #{convblock_forward.9} parent=35 // pred_region
          %s397 = ssub.s32 64, 64
          %398 = vsyncadd %s375, %s397
          %s399 = sadd.s32 %s26, %s25
          %s400 = smul.addr %s399, 64
          %s401 = scalar_lea.hbm %s4, %s400
          %s403 = sshll.u32 %s378, 4
          %s404 = int_to_ptr.vmem [resolvable:$true] %s403
          %406 = dma.vmem_to_hbm [thread:$0]  %s404, 64, %s401, %s375
        $region40: #{convblock_forward.9} parent=35 // pred_fallthru
          _
        // Predicated region
        $region41: #{convblock_forward.9} parent=35 // pred_check
          %p407 = pneg %p172
        $region42: #{convblock_forward.9} parent=35 // pred_check_branch
          %409 = sbr.rel (%p407) target = $region44
        $region43: #{convblock_forward.9} parent=35 // pred_region
          _
        $region44: #{convblock_forward.9} parent=35 // pred_fallthru
          _
        // Predicated region
        $region45: #{convblock_forward.9} parent=35 // pred_check
          %p410 = pneg %p200
        $region46: #{convblock_forward.9} parent=35 // pred_check_branch
          %412 = sbr.rel (%p410) target = $region48
        $region47: #{convblock_forward.9} parent=35 // pred_region
          _
        $region48: #{convblock_forward.9} parent=35 // pred_fallthru
          _
      $region36: #{convblock_forward.9} parent=5 // pred_fallthru
        _
      %p413 = scmp.le.s32.totalorder 2, %s16
      // Predicated region
      $region49: #{convblock_forward.9} parent=5 // pred_check
        %p414 = pneg %p413
      $region50: #{convblock_forward.9} parent=5 // pred_check_branch
        %416 = sbr.rel (%p414) target = $region52
      $region51: #{convblock_forward.9} parent=5 // pred_region
        %s417 = ssub.s32 %s16, 2
        // Predicated region
        $region53: #{convblock_forward.9} parent=51 // pred_check
          %p418 = pneg %p150
        $region54: #{convblock_forward.9} parent=51 // pred_check_branch
          %420 = sbr.rel (%p418) target = $region56
        $region55: #{convblock_forward.9} parent=51 // pred_region
          %s421 = sand.u32 %s135, 1
          %s422 = scalar_lea.sflag [#allocation3], %s421
          %s423 = sand.u32 %s135, 1
          %s424 = smul.addr %s423, 4
          %s425 = scalar_lea.vmem [#allocation2], %s424
          %426 = dma.done %s422, 64
        $region56: #{convblock_forward.9} parent=51 // pred_fallthru
          _
        // Predicated region
        $region57: #{convblock_forward.9} parent=51 // pred_check
          %p427 = pneg %p178
        $region58: #{convblock_forward.9} parent=51 // pred_check_branch
          %429 = sbr.rel (%p427) target = $region60
        $region59: #{convblock_forward.9} parent=51 // pred_region
          %p430 = scmp.lt.s32.totalorder %s27, 1
          %s431 = scalar_select %p430, %s27, 1
          %p432 = scmp.lt.s32.totalorder %s28, 0
          %s433 = scalar_select %p432, %s28, 0
          %s434 = sadd.s32 %s433, %s431
          %s435 = smul.addr %s434, 4
          %s436 = scalar_lea.vmem %s5, %s435
        $region60: #{convblock_forward.9} parent=51 // pred_fallthru
          _
        // Predicated region
        $region61: #{convblock_forward.9} parent=51 // pred_check
          %p437 = pneg %p206
        $region62: #{convblock_forward.9} parent=51 // pred_check_branch
          %439 = sbr.rel (%p437) target = $region64
        $region63: #{convblock_forward.9} parent=51 // pred_region
          %p440 = scmp.lt.s32.totalorder %s27, 1
          %s441 = scalar_select %p440, %s27, 1
          %p442 = scmp.lt.s32.totalorder %s28, 0
          %s443 = scalar_select %p442, %s28, 0
          %s444 = sadd.s32 %s443, %s441
          %s445 = smul.addr %s444, 4
          %s446 = scalar_lea.vmem %s6, %s445
        $region64: #{convblock_forward.9} parent=51 // pred_fallthru
          _
      $region52: #{convblock_forward.9} parent=5 // pred_fallthru
        _
    $region6: #{convblock_forward.9} parent=1 // loop_footer
      %s20 = sadd.s32 1, %s16
    $region7: #{convblock_forward.9} parent=1 // loop_footer_branch
      %15 = sbr.rel target = $region3
    $region8: #{convblock_forward.9} parent=1 // loop_exit
      _
    %447 = vsyncpa [#allocation3], 1
    %s448 = scalar_lea.sflag [#allocation3], 1
    %449 = vsyncpa %s448, 1

// kernel: convblock_forward.10
$region0: #{convblock_forward.10}
  #allocation0 [shape = 'u32[]', space=smem, size = 0x4, offset = 0x4, fixed_abs, tag = 'smem constant byte address 0x4 - core index']
  #allocation1 [shape = 'u32[144,128]{1,0:T(1,128)}', space=vmem, size = 0x12000, scoped, tag = 'internal scratch']
  %s0 = inlined_call_operand.vmem [shape: f32[2,4,16], index: 0, kind: input, shape index: {}]
  %s1 = inlined_call_operand.vmem [shape: f32[4,1], index: 1, kind: input, shape index: {}]
  %s2 = inlined_call_operand.vmem [shape: f32[4,1], index: 2, kind: input, shape index: {}]
  %s3 = inlined_call_operand.vmem [shape: f32[4,4], index: 3, kind: input, shape index: {}]
  %s4 = inlined_call_operand.vmem [shape: f32[2,4,16], index: 4, kind: output, shape index: {0}]
  %s5 = inlined_call_operand.vmem [shape: f32[2,1,4,2], index: 5, kind: output, shape index: {1}]
  %6 = xla_tuple %s4, %s5
  %s7 = sld [smem:[#allocation0]]
  $region57: #{convblock_forward.10} parent=0
    _
  %s9 = ssub.s32 1, %s7
  %s10 = scalar_select 0, %s9, %s7
  loop: start=0, step=1, limit=4
  $region2: #{convblock_forward.10} parent=0 // loop_pre_header
    _
  $region3: #{convblock_forward.10} parent=0 // loop_header
    %s12 = sphi 0, %s16
    %p13 = scmp.ge.s32.totalorder %s12, 4
    %s19 = sphi 0, %s31
    %s20 = sphi 0, %s27
    %s21 = sphi 0, %s19
    %s22 = sphi 0, %s20
    %s23 = sphi 0, %s21
    %s24 = sphi 0, %s22
    %s36 = sphi 0, %s38
    %s39 = sphi 0, %s36
    %s40 = sphi 0, %s39
    %s56 = sphi 0, %s40
    %s60 = sphi 0, %s60
    %s62 = sphi 0, %s60
    %s63 = sphi 0, %s62
    %s77 = sphi 0, %s63
    %s81 = sphi 0, %s81
    %s83 = sphi 0, %s81
    %s84 = sphi 0, %s83
    %s98 = sphi 0, %s84
    %s102 = sphi 0, %s102
    %s104 = sphi 0, %s102
    %s105 = sphi 0, %s104
    %s119 = sphi 0, %s105
    %s127 = sphi 0, %s129
    %s130 = sphi 0, %s127
    %s131 = sphi 0, %s130
    %s147 = sphi 0, %s131
    %s155 = sphi 0, %s157
    %s158 = sphi 0, %s155
    %s159 = sphi 0, %s158
    %s175 = sphi 0, %s159
  $region4: #{convblock_forward.10} parent=0 // loop_header_branch
    %15 = sbr.rel (%p13) target = $region8
  $region5: #{convblock_forward.10} parent=0 // loop_body
    %s17 = ssub.s32 %s12, 1
    %s18 = ssub.s32 %s12, 2
    %s25 = sadd.s32 1, %s20
    %p26 = scmp.ge.s32.totalorder %s25, 1
    %s27 = scalar_select %p26, 0, %s25
    %s28 = sadd.s32 1, %s19
    %s29 = scalar_select %p26, %s28, %s19
    %p30 = scmp.ge.s32.totalorder %s29, 2
    %s31 = scalar_select %p30, 0, %s29
    %s32 = ssub.s32 %s19, %s31
    %s33 = ssub.s32 %s20, %s27
    %s34 = sor.u32 %s32, %s33
    %p35 = scmp.eq.s32.totalorder %s34, 0
    %s37 = sadd.s32 %s36, 1
    %s38 = scalar_select %p35, %s36, %s37
    %p41 = pneg %p35
    %p42 = scmp.eq.s32.totalorder %s12, 1
    %p43 = por %p41, %p42
    %p44 = scmp.ne.s32.totalorder %s36, %s39
    %p45 = scmp.eq.s32.totalorder %s12, 0
    %p46 = por %p44, %p45
    %p47 = scmp.ne.s32.totalorder %s36, %s39
    %p48 = scmp.eq.s32.totalorder %s17, 1
    %p49 = por %p47, %p48
    %p50 = scmp.ne.s32.totalorder %s39, %s40
    %p51 = scmp.eq.s32.totalorder %s17, 0
    %p52 = por %p50, %p51
    %p53 = scmp.ne.s32.totalorder %s39, %s40
    %p54 = scmp.eq.s32.totalorder %s18, 1
    %p55 = por %p53, %p54
    %p57 = scmp.ne.s32.totalorder %s40, %s56
    %p58 = scmp.eq.s32.totalorder %s18, 0
    %p59 = por %p57, %p58
    %s61 = sadd.s32 %s60, 1
    %p64 = scmp.eq.s32.totalorder %s12, 1
    %p65 = scmp.ne.s32.totalorder %s60, %s62
    %p66 = scmp.eq.s32.totalorder %s12, 0
    %p67 = por %p65, %p66
    %p68 = scmp.ne.s32.totalorder %s60, %s62
    %p69 = scmp.eq.s32.totalorder %s17, 1
    %p70 = por %p68, %p69
    %p71 = scmp.ne.s32.totalorder %s62, %s63
    %p72 = scmp.eq.s32.totalorder %s17, 0
    %p73 = por %p71, %p72
    %p74 = scmp.ne.s32.totalorder %s62, %s63
    %p75 = scmp.eq.s32.totalorder %s18, 1
    %p76 = por %p74, %p75
    %p78 = scmp.ne.s32.totalorder %s63, %s77
    %p79 = scmp.eq.s32.totalorder %s18, 0
    %p80 = por %p78, %p79
    %s82 = sadd.s32 %s81, 1
    %p85 = scmp.eq.s32.totalorder %s12, 1
    %p86 = scmp.ne.s32.totalorder %s81, %s83
    %p87 = scmp.eq.s32.totalorder %s12, 0
    %p88 = por %p86, %p87
    %p89 = scmp.ne.s32.totalorder %s81, %s83
    %p90 = scmp.eq.s32.totalorder %s17, 1
    %p91 = por %p89, %p90
    %p92 = scmp.ne.s32.totalorder %s83, %s84
    %p93 = scmp.eq.s32.totalorder %s17, 0
    %p94 = por %p92, %p93
    %p95 = scmp.ne.s32.totalorder %s83, %s84
    %p96 = scmp.eq.s32.totalorder %s18, 1
    %p97 = por %p95, %p96
    %p99 = scmp.ne.s32.totalorder %s84, %s98
    %p100 = scmp.eq.s32.totalorder %s18, 0
    %p101 = por %p99, %p100
    %s103 = sadd.s32 %s102, 1
    %p106 = scmp.eq.s32.totalorder %s12, 1
    %p107 = scmp.ne.s32.totalorder %s102, %s104
    %p108 = scmp.eq.s32.totalorder %s12, 0
    %p109 = por %p107, %p108
    %p110 = scmp.ne.s32.totalorder %s102, %s104
    %p111 = scmp.eq.s32.totalorder %s17, 1
    %p112 = por %p110, %p111
    %p113 = scmp.ne.s32.totalorder %s104, %s105
    %p114 = scmp.eq.s32.totalorder %s17, 0
    %p115 = por %p113, %p114
    %p116 = scmp.ne.s32.totalorder %s104, %s105
    %p117 = scmp.eq.s32.totalorder %s18, 1
    %p118 = por %p116, %p117
    %p120 = scmp.ne.s32.totalorder %s105, %s119
    %p121 = scmp.eq.s32.totalorder %s18, 0
    %p122 = por %p120, %p121
    %s123 = ssub.s32 %s19, %s31
    %s124 = ssub.s32 %s20, %s27
    %s125 = sor.u32 %s123, %s124
    %p126 = scmp.eq.s32.totalorder %s125, 0
    %s128 = sadd.s32 %s127, 1
    %s129 = scalar_select %p126, %s127, %s128
    %p132 = pneg %p126
    %p133 = scmp.eq.s32.totalorder %s12, 1
    %p134 = por %p132, %p133
    %p135 = scmp.ne.s32.totalorder %s127, %s130
    %p136 = scmp.eq.s32.totalorder %s12, 0
    %p137 = por %p135, %p136
    %p138 = scmp.ne.s32.totalorder %s127, %s130
    %p139 = scmp.eq.s32.totalorder %s17, 1
    %p140 = por %p138, %p139
    %p141 = scmp.ne.s32.totalorder %s130, %s131
    %p142 = scmp.eq.s32.totalorder %s17, 0
    %p143 = por %p141, %p142
    %p144 = scmp.ne.s32.totalorder %s130, %s131
    %p145 = scmp.eq.s32.totalorder %s18, 1
    %p146 = por %p144, %p145
    %p148 = scmp.ne.s32.totalorder %s131, %s147
    %p149 = scmp.eq.s32.totalorder %s18, 0
    %p150 = por %p148, %p149
    %s151 = ssub.s32 %s19, %s31
    %s152 = ssub.s32 %s20, %s27
    %s153 = sor.u32 %s151, %s152
    %p154 = scmp.eq.s32.totalorder %s153, 0
    %s156 = sadd.s32 %s155, 1
    %s157 = scalar_select %p154, %s155, %s156
    %p160 = pneg %p154
    %p161 = scmp.eq.s32.totalorder %s12, 1
    %p162 = por %p160, %p161
    %p163 = scmp.ne.s32.totalorder %s155, %s158
    %p164 = scmp.eq.s32.totalorder %s12, 0
    %p165 = por %p163, %p164
    %p166 = scmp.ne.s32.totalorder %s155, %s158
    %p167 = scmp.eq.s32.totalorder %s17, 1
    %p168 = por %p166, %p167
    %p169 = scmp.ne.s32.totalorder %s158, %s159
    %p170 = scmp.eq.s32.totalorder %s17, 0
    %p171 = por %p169, %p170
    %p172 = scmp.ne.s32.totalorder %s158, %s159
    %p173 = scmp.eq.s32.totalorder %s18, 1
    %p174 = por %p172, %p173
    %p176 = scmp.ne.s32.totalorder %s159, %s175
    %p177 = scmp.eq.s32.totalorder %s18, 0
    %p178 = por %p176, %p177
    %p179 = scmp.le.s32.totalorder 1, %s12
    %p180 = scmp.lt.s32.totalorder %s12, 3
    %p181 = pnand %p179, %p180
    %p182 = pneg %p181
    // Predicated region
    $region9: #{convblock_forward.10} parent=5 // pred_check
      _
    $region10: #{convblock_forward.10} parent=5 // pred_check_branch
      %184 = sbr.rel (%p181) target = $region12
    $region11: #{convblock_forward.10} parent=5 // pred_region
      %s185 = ssub.s32 %s12, 1
      // Predicated region
      $region13: #{convblock_forward.10} parent=11 // pred_check
        %p186 = pneg %p73
      $region14: #{convblock_forward.10} parent=11 // pred_check_branch
        %188 = sbr.rel (%p186) target = $region16
      $region15: #{convblock_forward.10} parent=11 // pred_region
        _
      $region16: #{convblock_forward.10} parent=11 // pred_fallthru
        _
      // Predicated region
      $region17: #{convblock_forward.10} parent=11 // pred_check
        %p189 = pneg %p94
      $region18: #{convblock_forward.10} parent=11 // pred_check_branch
        %191 = sbr.rel (%p189) target = $region20
      $region19: #{convblock_forward.10} parent=11 // pred_region
        _
      $region20: #{convblock_forward.10} parent=11 // pred_fallthru
        _
      // Predicated region
      $region21: #{convblock_forward.10} parent=11 // pred_check
        %p192 = pneg %p115
      $region22: #{convblock_forward.10} parent=11 // pred_check_branch
        %194 = sbr.rel (%p192) target = $region24
      $region23: #{convblock_forward.10} parent=11 // pred_region
        _
      $region24: #{convblock_forward.10} parent=11 // pred_fallthru
        _
    $region12: #{convblock_forward.10} parent=5 // pred_fallthru
      _
    %p195 = scmp.lt.s32.totalorder %s12, 2
    // Predicated region
    $region25: #{convblock_forward.10} parent=5 // pred_check
      %p196 = pneg %p195
    $region26: #{convblock_forward.10} parent=5 // pred_check_branch
      %198 = sbr.rel (%p196) target = $region28
    $region27: #{convblock_forward.10} parent=5 // pred_region
      // Predicated region
      $region29: #{convblock_forward.10} parent=27 // pred_check
        %p199 = pneg %p46
      $region30: #{convblock_forward.10} parent=27 // pred_check_branch
        %201 = sbr.rel (%p199) target = $region32
      $region31: #{convblock_forward.10} parent=27 // pred_region
        %p202 = scmp.lt.s32.totalorder %s19, 1
        %s203 = scalar_select %p202, %s19, 1
        %p204 = scmp.lt.s32.totalorder %s20, 0
        %s205 = scalar_select %p204, %s20, 0
        %s206 = sadd.s32 %s205, %s203
        %s207 = smul.addr %s206, 4
        %s208 = scalar_lea.vmem %s0, %s207
      $region32: #{convblock_forward.10} parent=27 // pred_fallthru
        _
    $region28: #{convblock_forward.10} parent=5 // pred_fallthru
      _
    %p209 = scmp.le.s32.totalorder 1, %s12
    %p210 = scmp.lt.s32.totalorder %s12, 3
    %p211 = pnand %p209, %p210
    %p212 = pneg %p211
    // Predicated region
    $region33: #{convblock_forward.10} parent=5 // pred_check
      _
    $region34: #{convblock_forward.10} parent=5 // pred_check_branch
      %214 = sbr.rel (%p211) target = $region36
    $region35: #{convblock_forward.10} parent=5 // pred_region
      %s215 = ssub.s32 %s12, 1
      %p216 = scmp.lt.s32.totalorder %s21, 1
      %s217 = scalar_select %p216, %s21, 1
      %p218 = scmp.lt.s32.totalorder %s22, 0
      %s219 = scalar_select %p218, %s22, 0
      %s220 = sadd.s32 %s219, %s217
      %s221 = smul.addr %s220, 4
      %s222 = scalar_lea.vmem %s0, %s221
      %p223 = pneg %p52
      %p224 = pneg %p49
      %p225 = pneg %p73
      %p226 = pneg %p70
      %p227 = pneg %p94
      %p228 = pneg %p91
      %p229 = pneg %p115
      %p230 = pneg %p112
      %p231 = pneg %p143
      %p232 = pneg %p140
      %p233 = scmp.lt.s32.totalorder %s21, 1
      %s234 = scalar_select %p233, %s21, 1
      %p235 = scmp.lt.s32.totalorder %s22, 0
      %s236 = scalar_select %p235, %s22, 0
      %s237 = sadd.s32 %s236, %s234
      %s238 = smul.addr %s237, 4
      %s239 = scalar_lea.vmem %s4, %s238
      %p240 = pneg %p171
      %p241 = pneg %p168
      %p242 = scmp.lt.s32.totalorder %s21, 1
      %s243 = scalar_select %p242, %s21, 1
      %p244 = scmp.lt.s32.totalorder %s22, 0
      %s245 = scalar_select %p244, %s22, 0
      %s246 = sadd.s32 %s245, %s243
      %s247 = smul.addr %s246, 4
      %s248 = scalar_lea.vmem %s5, %s247
      %p249 = scmp.lt.s32.totalorder %s21, 1
      %s250 = scalar_select %p249, %s21, 1
      %p251 = scmp.lt.s32.totalorder %s22, 0
      %s252 = scalar_select %p251, %s22, 0
      %s253 = sadd.s32 %s252, %s250
      %s254 = smul.addr %s253, 4
      %s255 = scalar_lea.vmem %s0, %s254
      %p256 = scmp.lt.s32.totalorder %s21, 1
      %s257 = scalar_select %p256, %s21, 1
      %p258 = scmp.lt.s32.totalorder %s22, 0
      %s259 = scalar_select %p258, %s22, 0
      %s260 = sadd.s32 %s259, %s257
      %s261 = smul.addr %s260, 4
      %s262 = scalar_lea.vmem %s4, %s261
      %p263 = scmp.lt.s32.totalorder %s21, 1
      %s264 = scalar_select %p263, %s21, 1
      %p265 = scmp.lt.s32.totalorder %s22, 0
      %s266 = scalar_select %p265, %s22, 0
      %s267 = sadd.s32 %s266, %s264
      %s268 = smul.addr %s267, 4
      %s269 = scalar_lea.vmem %s5, %s268
      %v270 = vld [vmem:[%s1] sm:$0xf]
      %v271 = vld [vmem:[%s2] sm:$0xf]
      %v272 = vld [vmem:[%s255] sm:$0xf]
      %274 = vset.pattern.permute.xlu0 0
      %275 = vperm.xlu0 %274, %v270
      %v276 = vpop.permute.xlu0 %275
      %v278 = vmul.f32 %v272, %v276
      %280 = vset.pattern.permute.xlu0 0
      %281 = vperm.xlu0 %280, %v271
      %v282 = vpop.permute.xlu0 %281
      %v284 = vadd.f32 %v278, %v282
      %v285 = vsub.f32 0.0, %v284
      %v286 = vmul.f32 %v285, 1.442695
      %v287 = vpow.pop %v286
      %v288 = vadd.f32 %v287, 1.0
      %v289 = vrcp.pop %v288
      %v290 = vmul.f32 1.0, %v289
      %v291 = vmul.f32 %v284, %v290
      %v292 = vld [vmem:[%s3] sm:$0xf]
      %vm293 = vcmask 31744
      %v295 = vsel %vm293, %v292, 0
      %vm297 = vcmask 1043456
      %v299 = vsel %vm297, %v291, 0
      %301 = vmatprep.subr.mxu0 0.0
      %302 = vmatpush1.msra.mxu0 %v299
      %303 = vmatprep.subr.mxu0 0.0
      %304 = vmatpush1.msra.mxu0 0.0
      %305 = vmatprep.subr.mxu0 0.0
      %306 = vmatpush1.msra.mxu0 0.0
      %307 = vmatprep.subr.mxu0 0.0
      %308 = vmatpush1.msra.mxu0 0.0
      %309 = vmatprep.subr.mxu0 0.0
      %310 = vmatpush1.msra.mxu0 0.0
      %311 = vmatprep.subr.mxu0 0.0
      %312 = vmatpush1.msra.mxu0 0.0
      %313 = vmatprep.subr.mxu0 0.0
      %314 = vmatpush1.msra.mxu0 0.0
      %315 = vmatprep.subr.mxu0 0.0
      %316 = vmatpush1.msra.mxu0 0.0
      %317 = vmatprep.subr.mxu0 0.0
      %318 = vmatpush1.msra.mxu0 0.0
      %319 = vmatprep.subr.mxu0 0.0
      %320 = vmatpush1.msra.mxu0 0.0
      %321 = vmatprep.subr.mxu0 0.0
      %322 = vmatpush1.msra.mxu0 0.0
      %323 = vmatprep.subr.mxu0 0.0
      %324 = vmatpush1.msra.mxu0 0.0
      %325 = vmatprep.subr.mxu0 0.0
      %326 = vmatpush1.msra.mxu0 0.0
      %327 = vmatprep.subr.mxu0 0.0
      %328 = vmatpush1.msra.mxu0 0.0
      %329 = vmatprep.subr.mxu0 0.0
      %330 = vmatpush1.msra.mxu0 0.0
      %331 = vmatprep.subr.mxu0 0.0
      %332 = vmatpush1.msra.mxu0 0.0
      %333 = vmatprep.subr.mxu0 0.0
      %334 = vmatpush1.msra.mxu0 0.0
      %335 = vmatprep.subr.mxu0 0.0
      %336 = vmatpush1.msra.mxu0 0.0
      %337 = vmatprep.subr.mxu0 0.0
      %338 = vmatpush1.msra.mxu0 0.0
      %339 = vmatprep.subr.mxu0 0.0
      %340 = vmatpush1.msra.mxu0 0.0
      %341 = vmatprep.subr.mxu0 0.0
      %342 = vmatpush1.msra.mxu0 0.0
      %343 = vmatprep.subr.mxu0 0.0
      %344 = vmatpush1.msra.mxu0 0.0
      %345 = vmatprep.subr.mxu0 0.0
      %346 = vmatpush1.msra.mxu0 0.0
      %347 = vmatprep.subr.mxu0 0.0
      %348 = vmatpush1.msra.mxu0 0.0
      %349 = vmatprep.subr.mxu0 0.0
      %350 = vmatpush1.msra.mxu0 0.0
      %351 = vmatprep.subr.mxu0 0.0
      %352 = vmatpush1.msra.mxu0 0.0
      %353 = vmatprep.subr.mxu0 0.0
      %354 = vmatpush1.msra.mxu0 0.0
      %355 = vmatprep.subr.mxu0 0.0
      %356 = vmatpush1.msra.mxu0 0.0
      %357 = vmatprep.subr.mxu0 0.0
      %358 = vmatpush1.msra.mxu0 0.0
      %359 = vmatprep.subr.mxu0 0.0
      %360 = vmatpush1.msra.mxu0 0.0
      %361 = vmatprep.subr.mxu0 0.0
      %362 = vmatpush1.msra.mxu0 0.0
      %363 = vmatprep.subr.mxu0 0.0
      %364 = vmatpush1.msra.mxu0 0.0
      %365 = vmatprep.mubr.f32.mxu0 0.0
      %366 = vmatmul.mubr.f32.gmra.mrb[0].mxu0 %v295
      %v367 = vpop.f32.mrb[0].mxu0
      %v368 = vadd.f32 0.0, %v367
      %v369 = vpop.f32.mrb[0].mxu0
      %370 = vdwg.mxu0
      %vm371 = vcmask 125952
      %372 = vst.msk [vmem:[%s262] sm:$0xf] %vm371, %v368
      %v373 = vsel %vm371, %v368, 0.0
      %374 = vadd.xlane.f32.xlu0 %v373
      %v375 = vpop.xlane.xlu0 %374
      %v376 = vmul.f32 %v368, %v368
      %v377 = vsel %vm371, %v376, 0.0
      %378 = vadd.xlane.f32.xlu0 %v377
      %v379 = vpop.xlane.xlu0 %378
      %vm380 = vcmask 7168
      %v381 = vsel %vm380, %v375, %v379
      %vm382 = vcmask 11264
      %383 = vst.msk [vmem:[%s269] sm:$0xf] %vm382, %v381
      %p384 = scmp.lt.s32.totalorder %s21, 1
      %s385 = scalar_select %p384, %s21, 1
      %p386 = scmp.lt.s32.totalorder %s22, 0
      %s387 = scalar_select %p386, %s22, 0
      %s388 = sadd.s32 %s387, %s385
      %s389 = smul.addr %s388, 4
      %s390 = scalar_lea.vmem %s4, %s389
      %p391 = scmp.lt.s32.totalorder %s21, 1
      %s392 = scalar_select %p391, %s21, 1
      %p393 = scmp.lt.s32.totalorder %s22, 0
      %s394 = scalar_select %p393, %s22, 0
      %s395 = sadd.s32 %s394, %s392
      %s396 = smul.addr %s395, 4
      %s397 = scalar_lea.vmem %s5, %s396
      // Predicated region
      $region37: #{convblock_forward.10} parent=35 // pred_check
        %p398 = pneg %p140
      $region38: #{convblock_forward.10} parent=35 // pred_check_branch
        %400 = sbr.rel (%p398) target = $region40
      $region39: #{convblock_forward.10} parent=35 // pred_region
        _
      $region40: #{convblock_forward.10} parent=35 // pred_fallthru
        _
      // Predicated region
      $region41: #{convblock_forward.10} parent=35 // pred_check
        %p401 = pneg %p168
      $region42: #{convblock_forward.10} parent=35 // pred_check_branch
        %403 = sbr.rel (%p401) target = $region44
      $region43: #{convblock_forward.10} parent=35 // pred_region
        _
      $region44: #{convblock_forward.10} parent=35 // pred_fallthru
        _
    $region36: #{convblock_forward.10} parent=5 // pred_fallthru
      _
    %p404 = scmp.le.s32.totalorder 2, %s12
    // Predicated region
    $region45: #{convblock_forward.10} parent=5 // pred_check
      %p405 = pneg %p404
    $region46: #{convblock_forward.10} parent=5 // pred_check_branch
      %407 = sbr.rel (%p405) target = $region48
    $region47: #{convblock_forward.10} parent=5 // pred_region
      %s408 = ssub.s32 %s12, 2
      // Predicated region
      $region49: #{convblock_forward.10} parent=47 // pred_check
        %p409 = pneg %p146
      $region50: #{convblock_forward.10} parent=47 // pred_check_branch
        %411 = sbr.rel (%p409) target = $region52
      $region51: #{convblock_forward.10} parent=47 // pred_region
        %p412 = scmp.lt.s32.totalorder %s23, 1
        %s413 = scalar_select %p412, %s23, 1
        %p414 = scmp.lt.s32.totalorder %s24, 0
        %s415 = scalar_select %p414, %s24, 0
        %s416 = sadd.s32 %s415, %s413
        %s417 = smul.addr %s416, 4
        %s418 = scalar_lea.vmem %s4, %s417
      $region52: #{convblock_forward.10} parent=47 // pred_fallthru
        _
      // Predicated region
      $region53: #{convblock_forward.10} parent=47 // pred_check
        %p419 = pneg %p174
      $region54: #{convblock_forward.10} parent=47 // pred_check_branch
        %421 = sbr.rel (%p419) target = $region56
      $region55: #{convblock_forward.10} parent=47 // pred_region
        %p422 = scmp.lt.s32.totalorder %s23, 1
        %s423 = scalar_select %p422, %s23, 1
        %p424 = scmp.lt.s32.totalorder %s24, 0
        %s425 = scalar_select %p424, %s24, 0
        %s426 = sadd.s32 %s425, %s423
        %s427 = smul.addr %s426, 4
        %s428 = scalar_lea.vmem %s5, %s427
      $region56: #{convblock_forward.10} parent=47 // pred_fallthru
        _
    $region48: #{convblock_forward.10} parent=5 // pred_fallthru
      _
  $region6: #{convblock_forward.10} parent=0 // loop_footer
    %s16 = sadd.s32 1, %s12
  $region7: #{convblock_forward.10} parent=0 // loop_footer_branch
    %11 = sbr.rel target = $region3
  $region8: #{convblock_forward.10} parent=0 // loop_exit
    _

// kernel: convblock_forward.7
$region0: #{convblock_forward.7}
  #allocation0 [shape = 'u32[]', space=smem, size = 0x4, offset = 0x4, fixed_abs, tag = 'smem constant byte address 0x4 - core index']
  #allocation1 [shape = 'u32[144,128]{1,0:T(1,128)}', space=vmem, size = 0x12000, scoped, tag = 'internal scratch']
  %s0 = inlined_call_operand.vmem [shape: f32[2,4,16], index: 0, kind: input, shape index: {}]
  %s1 = inlined_call_operand.vmem [shape: f32[4,1], index: 1, kind: input, shape index: {}]
  %s2 = inlined_call_operand.vmem [shape: f32[4,1], index: 2, kind: input, shape index: {}]
  %s3 = inlined_call_operand.vmem [shape: f32[4,3], index: 3, kind: input, shape index: {}]
  %s4 = inlined_call_operand.vmem [shape: f32[2,4,16], index: 4, kind: output, shape index: {0}]
  %s5 = inlined_call_operand.vmem [shape: f32[2,1,4,2], index: 5, kind: output, shape index: {1}]
  %6 = xla_tuple %s4, %s5
  %s7 = sld [smem:[#allocation0]]
  $region57: #{convblock_forward.7} parent=0
    _
  %s9 = ssub.s32 1, %s7
  %s10 = scalar_select 0, %s9, %s7
  loop: start=0, step=1, limit=4
  $region2: #{convblock_forward.7} parent=0 // loop_pre_header
    _
  $region3: #{convblock_forward.7} parent=0 // loop_header
    %s12 = sphi 0, %s16
    %p13 = scmp.ge.s32.totalorder %s12, 4
    %s19 = sphi 0, %s31
    %s20 = sphi 0, %s27
    %s21 = sphi 0, %s19
    %s22 = sphi 0, %s20
    %s23 = sphi 0, %s21
    %s24 = sphi 0, %s22
    %s36 = sphi 0, %s38
    %s39 = sphi 0, %s36
    %s40 = sphi 0, %s39
    %s56 = sphi 0, %s40
    %s60 = sphi 0, %s60
    %s62 = sphi 0, %s60
    %s63 = sphi 0, %s62
    %s77 = sphi 0, %s63
    %s81 = sphi 0, %s81
    %s83 = sphi 0, %s81
    %s84 = sphi 0, %s83
    %s98 = sphi 0, %s84
    %s102 = sphi 0, %s102
    %s104 = sphi 0, %s102
    %s105 = sphi 0, %s104
    %s119 = sphi 0, %s105
    %s127 = sphi 0, %s129
    %s130 = sphi 0, %s127
    %s131 = sphi 0, %s130
    %s147 = sphi 0, %s131
    %s155 = sphi 0, %s157
    %s158 = sphi 0, %s155
    %s159 = sphi 0, %s158
    %s175 = sphi 0, %s159
  $region4: #{convblock_forward.7} parent=0 // loop_header_branch
    %15 = sbr.rel (%p13) target = $region8
  $region5: #{convblock_forward.7} parent=0 // loop_body
    %s17 = ssub.s32 %s12, 1
    %s18 = ssub.s32 %s12, 2
    %s25 = sadd.s32 1, %s20
    %p26 = scmp.ge.s32.totalorder %s25, 1
    %s27 = scalar_select %p26, 0, %s25
    %s28 = sadd.s32 1, %s19
    %s29 = scalar_select %p26, %s28, %s19
    %p30 = scmp.ge.s32.totalorder %s29, 2
    %s31 = scalar_select %p30, 0, %s29
    %s32 = ssub.s32 %s19, %s31
    %s33 = ssub.s32 %s20, %s27
    %s34 = sor.u32 %s32, %s33
    %p35 = scmp.eq.s32.totalorder %s34, 0
    %s37 = sadd.s32 %s36, 1
    %s38 = scalar_select %p35, %s36, %s37
    %p41 = pneg %p35
    %p42 = scmp.eq.s32.totalorder %s12, 1
    %p43 = por %p41, %p42
    %p44 = scmp.ne.s32.totalorder %s36, %s39
    %p45 = scmp.eq.s32.totalorder %s12, 0
    %p46 = por %p44, %p45
    %p47 = scmp.ne.s32.totalorder %s36, %s39
    %p48 = scmp.eq.s32.totalorder %s17, 1
    %p49 = por %p47, %p48
    %p50 = scmp.ne.s32.totalorder %s39, %s40
    %p51 = scmp.eq.s32.totalorder %s17, 0
    %p52 = por %p50, %p51
    %p53 = scmp.ne.s32.totalorder %s39, %s40
    %p54 = scmp.eq.s32.totalorder %s18, 1
    %p55 = por %p53, %p54
    %p57 = scmp.ne.s32.totalorder %s40, %s56
    %p58 = scmp.eq.s32.totalorder %s18, 0
    %p59 = por %p57, %p58
    %s61 = sadd.s32 %s60, 1
    %p64 = scmp.eq.s32.totalorder %s12, 1
    %p65 = scmp.ne.s32.totalorder %s60, %s62
    %p66 = scmp.eq.s32.totalorder %s12, 0
    %p67 = por %p65, %p66
    %p68 = scmp.ne.s32.totalorder %s60, %s62
    %p69 = scmp.eq.s32.totalorder %s17, 1
    %p70 = por %p68, %p69
    %p71 = scmp.ne.s32.totalorder %s62, %s63
    %p72 = scmp.eq.s32.totalorder %s17, 0
    %p73 = por %p71, %p72
    %p74 = scmp.ne.s32.totalorder %s62, %s63
    %p75 = scmp.eq.s32.totalorder %s18, 1
    %p76 = por %p74, %p75
    %p78 = scmp.ne.s32.totalorder %s63, %s77
    %p79 = scmp.eq.s32.totalorder %s18, 0
    %p80 = por %p78, %p79
    %s82 = sadd.s32 %s81, 1
    %p85 = scmp.eq.s32.totalorder %s12, 1
    %p86 = scmp.ne.s32.totalorder %s81, %s83
    %p87 = scmp.eq.s32.totalorder %s12, 0
    %p88 = por %p86, %p87
    %p89 = scmp.ne.s32.totalorder %s81, %s83
    %p90 = scmp.eq.s32.totalorder %s17, 1
    %p91 = por %p89, %p90
    %p92 = scmp.ne.s32.totalorder %s83, %s84
    %p93 = scmp.eq.s32.totalorder %s17, 0
    %p94 = por %p92, %p93
    %p95 = scmp.ne.s32.totalorder %s83, %s84
    %p96 = scmp.eq.s32.totalorder %s18, 1
    %p97 = por %p95, %p96
    %p99 = scmp.ne.s32.totalorder %s84, %s98
    %p100 = scmp.eq.s32.totalorder %s18, 0
    %p101 = por %p99, %p100
    %s103 = sadd.s32 %s102, 1
    %p106 = scmp.eq.s32.totalorder %s12, 1
    %p107 = scmp.ne.s32.totalorder %s102, %s104
    %p108 = scmp.eq.s32.totalorder %s12, 0
    %p109 = por %p107, %p108
    %p110 = scmp.ne.s32.totalorder %s102, %s104
    %p111 = scmp.eq.s32.totalorder %s17, 1
    %p112 = por %p110, %p111
    %p113 = scmp.ne.s32.totalorder %s104, %s105
    %p114 = scmp.eq.s32.totalorder %s17, 0
    %p115 = por %p113, %p114
    %p116 = scmp.ne.s32.totalorder %s104, %s105
    %p117 = scmp.eq.s32.totalorder %s18, 1
    %p118 = por %p116, %p117
    %p120 = scmp.ne.s32.totalorder %s105, %s119
    %p121 = scmp.eq.s32.totalorder %s18, 0
    %p122 = por %p120, %p121
    %s123 = ssub.s32 %s19, %s31
    %s124 = ssub.s32 %s20, %s27
    %s125 = sor.u32 %s123, %s124
    %p126 = scmp.eq.s32.totalorder %s125, 0
    %s128 = sadd.s32 %s127, 1
    %s129 = scalar_select %p126, %s127, %s128
    %p132 = pneg %p126
    %p133 = scmp.eq.s32.totalorder %s12, 1
    %p134 = por %p132, %p133
    %p135 = scmp.ne.s32.totalorder %s127, %s130
    %p136 = scmp.eq.s32.totalorder %s12, 0
    %p137 = por %p135, %p136
    %p138 = scmp.ne.s32.totalorder %s127, %s130
    %p139 = scmp.eq.s32.totalorder %s17, 1
    %p140 = por %p138, %p139
    %p141 = scmp.ne.s32.totalorder %s130, %s131
    %p142 = scmp.eq.s32.totalorder %s17, 0
    %p143 = por %p141, %p142
    %p144 = scmp.ne.s32.totalorder %s130, %s131
    %p145 = scmp.eq.s32.totalorder %s18, 1
    %p146 = por %p144, %p145
    %p148 = scmp.ne.s32.totalorder %s131, %s147
    %p149 = scmp.eq.s32.totalorder %s18, 0
    %p150 = por %p148, %p149
    %s151 = ssub.s32 %s19, %s31
    %s152 = ssub.s32 %s20, %s27
    %s153 = sor.u32 %s151, %s152
    %p154 = scmp.eq.s32.totalorder %s153, 0
    %s156 = sadd.s32 %s155, 1
    %s157 = scalar_select %p154, %s155, %s156
    %p160 = pneg %p154
    %p161 = scmp.eq.s32.totalorder %s12, 1
    %p162 = por %p160, %p161
    %p163 = scmp.ne.s32.totalorder %s155, %s158
    %p164 = scmp.eq.s32.totalorder %s12, 0
    %p165 = por %p163, %p164
    %p166 = scmp.ne.s32.totalorder %s155, %s158
    %p167 = scmp.eq.s32.totalorder %s17, 1
    %p168 = por %p166, %p167
    %p169 = scmp.ne.s32.totalorder %s158, %s159
    %p170 = scmp.eq.s32.totalorder %s17, 0
    %p171 = por %p169, %p170
    %p172 = scmp.ne.s32.totalorder %s158, %s159
    %p173 = scmp.eq.s32.totalorder %s18, 1
    %p174 = por %p172, %p173
    %p176 = scmp.ne.s32.totalorder %s159, %s175
    %p177 = scmp.eq.s32.totalorder %s18, 0
    %p178 = por %p176, %p177
    %p179 = scmp.le.s32.totalorder 1, %s12
    %p180 = scmp.lt.s32.totalorder %s12, 3
    %p181 = pnand %p179, %p180
    %p182 = pneg %p181
    // Predicated region
    $region9: #{convblock_forward.7} parent=5 // pred_check
      _
    $region10: #{convblock_forward.7} parent=5 // pred_check_branch
      %184 = sbr.rel (%p181) target = $region12
    $region11: #{convblock_forward.7} parent=5 // pred_region
      %s185 = ssub.s32 %s12, 1
      // Predicated region
      $region13: #{convblock_forward.7} parent=11 // pred_check
        %p186 = pneg %p73
      $region14: #{convblock_forward.7} parent=11 // pred_check_branch
        %188 = sbr.rel (%p186) target = $region16
      $region15: #{convblock_forward.7} parent=11 // pred_region
        _
      $region16: #{convblock_forward.7} parent=11 // pred_fallthru
        _
      // Predicated region
      $region17: #{convblock_forward.7} parent=11 // pred_check
        %p189 = pneg %p94
      $region18: #{convblock_forward.7} parent=11 // pred_check_branch
        %191 = sbr.rel (%p189) target = $region20
      $region19: #{convblock_forward.7} parent=11 // pred_region
        _
      $region20: #{convblock_forward.7} parent=11 // pred_fallthru
        _
      // Predicated region
      $region21: #{convblock_forward.7} parent=11 // pred_check
        %p192 = pneg %p115
      $region22: #{convblock_forward.7} parent=11 // pred_check_branch
        %194 = sbr.rel (%p192) target = $region24
      $region23: #{convblock_forward.7} parent=11 // pred_region
        _
      $region24: #{convblock_forward.7} parent=11 // pred_fallthru
        _
    $region12: #{convblock_forward.7} parent=5 // pred_fallthru
      _
    %p195 = scmp.lt.s32.totalorder %s12, 2
    // Predicated region
    $region25: #{convblock_forward.7} parent=5 // pred_check
      %p196 = pneg %p195
    $region26: #{convblock_forward.7} parent=5 // pred_check_branch
      %198 = sbr.rel (%p196) target = $region28
    $region27: #{convblock_forward.7} parent=5 // pred_region
      // Predicated region
      $region29: #{convblock_forward.7} parent=27 // pred_check
        %p199 = pneg %p46
      $region30: #{convblock_forward.7} parent=27 // pred_check_branch
        %201 = sbr.rel (%p199) target = $region32
      $region31: #{convblock_forward.7} parent=27 // pred_region
        %p202 = scmp.lt.s32.totalorder %s19, 1
        %s203 = scalar_select %p202, %s19, 1
        %p204 = scmp.lt.s32.totalorder %s20, 0
        %s205 = scalar_select %p204, %s20, 0
        %s206 = sadd.s32 %s205, %s203
        %s207 = smul.addr %s206, 4
        %s208 = scalar_lea.vmem %s0, %s207
      $region32: #{convblock_forward.7} parent=27 // pred_fallthru
        _
    $region28: #{convblock_forward.7} parent=5 // pred_fallthru
      _
    %p209 = scmp.le.s32.totalorder 1, %s12
    %p210 = scmp.lt.s32.totalorder %s12, 3
    %p211 = pnand %p209, %p210
    %p212 = pneg %p211
    // Predicated region
    $region33: #{convblock_forward.7} parent=5 // pred_check
      _
    $region34: #{convblock_forward.7} parent=5 // pred_check_branch
      %214 = sbr.rel (%p211) target = $region36
    $region35: #{convblock_forward.7} parent=5 // pred_region
      %s215 = ssub.s32 %s12, 1
      %p216 = scmp.lt.s32.totalorder %s21, 1
      %s217 = scalar_select %p216, %s21, 1
      %p218 = scmp.lt.s32.totalorder %s22, 0
      %s219 = scalar_select %p218, %s22, 0
      %s220 = sadd.s32 %s219, %s217
      %s221 = smul.addr %s220, 4
      %s222 = scalar_lea.vmem %s0, %s221
      %p223 = pneg %p52
      %p224 = pneg %p49
      %p225 = pneg %p73
      %p226 = pneg %p70
      %p227 = pneg %p94
      %p228 = pneg %p91
      %p229 = pneg %p115
      %p230 = pneg %p112
      %p231 = pneg %p143
      %p232 = pneg %p140
      %p233 = scmp.lt.s32.totalorder %s21, 1
      %s234 = scalar_select %p233, %s21, 1
      %p235 = scmp.lt.s32.totalorder %s22, 0
      %s236 = scalar_select %p235, %s22, 0
      %s237 = sadd.s32 %s236, %s234
      %s238 = smul.addr %s237, 4
      %s239 = scalar_lea.vmem %s4, %s238
      %p240 = pneg %p171
      %p241 = pneg %p168
      %p242 = scmp.lt.s32.totalorder %s21, 1
      %s243 = scalar_select %p242, %s21, 1
      %p244 = scmp.lt.s32.totalorder %s22, 0
      %s245 = scalar_select %p244, %s22, 0
      %s246 = sadd.s32 %s245, %s243
      %s247 = smul.addr %s246, 4
      %s248 = scalar_lea.vmem %s5, %s247
      %p249 = scmp.lt.s32.totalorder %s21, 1
      %s250 = scalar_select %p249, %s21, 1
      %p251 = scmp.lt.s32.totalorder %s22, 0
      %s252 = scalar_select %p251, %s22, 0
      %s253 = sadd.s32 %s252, %s250
      %s254 = smul.addr %s253, 4
      %s255 = scalar_lea.vmem %s0, %s254
      %p256 = scmp.lt.s32.totalorder %s21, 1
      %s257 = scalar_select %p256, %s21, 1
      %p258 = scmp.lt.s32.totalorder %s22, 0
      %s259 = scalar_select %p258, %s22, 0
      %s260 = sadd.s32 %s259, %s257
      %s261 = smul.addr %s260, 4
      %s262 = scalar_lea.vmem %s4, %s261
      %p263 = scmp.lt.s32.totalorder %s21, 1
      %s264 = scalar_select %p263, %s21, 1
      %p265 = scmp.lt.s32.totalorder %s22, 0
      %s266 = scalar_select %p265, %s22, 0
      %s267 = sadd.s32 %s266, %s264
      %s268 = smul.addr %s267, 4
      %s269 = scalar_lea.vmem %s5, %s268
      %v270 = vld [vmem:[%s1] sm:$0xf]
      %v271 = vld [vmem:[%s2] sm:$0xf]
      %v272 = vld [vmem:[%s255] sm:$0xf]
      %274 = vset.pattern.permute.xlu0 0
      %275 = vperm.xlu0 %274, %v270
      %v276 = vpop.permute.xlu0 %275
      %v278 = vmul.f32 %v272, %v276
      %280 = vset.pattern.permute.xlu0 0
      %281 = vperm.xlu0 %280, %v271
      %v282 = vpop.permute.xlu0 %281
      %v284 = vadd.f32 %v278, %v282
      %v285 = vsub.f32 0.0, %v284
      %v286 = vmul.f32 %v285, 1.442695
      %v287 = vpow.pop %v286
      %v288 = vadd.f32 %v287, 1.0
      %v289 = vrcp.pop %v288
      %v290 = vmul.f32 1.0, %v289
      %v291 = vmul.f32 %v284, %v290
      %293 = vrot.lane.b32.xlu0 %v291, 1
      %v294 = vpop.permute.xlu0 %293
      %vm296 = vcmask 7168
      %v297 = vsel %vm296, 0.0, %v294
      %298 = vrot.lane.b32.xlu0 %v291, 127
      %v299 = vpop.permute.xlu0 %298
      %vm301 = vcmask 121856
      %v302 = vsel %vm301, %v299, 0.0
      %v303 = vld [vmem:[%s3] sm:$0xf]
      %305 = vset.pattern.permute.xlu0 0
      %306 = vperm.xlu0 %305, %v303
      %v307 = vpop.permute.xlu0 %306
      %v309 = vmul.f32 %v307, %v297
      %310 = vset.pattern.permute.xlu0 1
      %311 = vperm.xlu0 %310, %v303
      %v312 = vpop.permute.xlu0 %311
      %v314 = vmul.f32 %v312, %v291
      %v315 = vadd.f32 %v309, %v314
      %316 = vset.pattern.permute.xlu0 2
      %317 = vperm.xlu0 %316, %v303
      %v318 = vpop.permute.xlu0 %317
      %v320 = vmul.f32 %v318, %v302
      %v321 = vadd.f32 %v315, %v320
      %vm322 = vcmask 125952
      %323 = vst.msk [vmem:[%s262] sm:$0xf] %vm322, %v321
      %v324 = vsel %vm322, %v321, 0.0
      %325 = vadd.xlane.f32.xlu0 %v324
      %v326 = vpop.xlane.xlu0 %325
      %v327 = vmul.f32 %v321, %v321
      %v328 = vsel %vm322, %v327, 0.0
      %329 = vadd.xlane.f32.xlu0 %v328
      %v330 = vpop.xlane.xlu0 %329
      %v331 = vsel %vm296, %v326, %v330
      %vm332 = vcmask 11264
      %333 = vst.msk [vmem:[%s269] sm:$0xf] %vm332, %v331
      %p334 = scmp.lt.s32.totalorder %s21, 1
      %s335 = scalar_select %p334, %s21, 1
      %p336 = scmp.lt.s32.totalorder %s22, 0
      %s337 = scalar_select %p336, %s22, 0
      %s338 = sadd.s32 %s337, %s335
      %s339 = smul.addr %s338, 4
      %s340 = scalar_lea.vmem %s4, %s339
      %p341 = scmp.lt.s32.totalorder %s21, 1
      %s342 = scalar_select %p341, %s21, 1
      %p343 = scmp.lt.s32.totalorder %s22, 0
      %s344 = scalar_select %p343, %s22, 0
      %s345 = sadd.s32 %s344, %s342
      %s346 = smul.addr %s345, 4
      %s347 = scalar_lea.vmem %s5, %s346
      // Predicated region
      $region37: #{convblock_forward.7} parent=35 // pred_check
        %p348 = pneg %p140
      $region38: #{convblock_forward.7} parent=35 // pred_check_branch
        %350 = sbr.rel (%p348) target = $region40
      $region39: #{convblock_forward.7} parent=35 // pred_region
        _
      $region40: #{convblock_forward.7} parent=35 // pred_fallthru
        _
      // Predicated region
      $region41: #{convblock_forward.7} parent=35 // pred_check
        %p351 = pneg %p168
      $region42: #{convblock_forward.7} parent=35 // pred_check_branch
        %353 = sbr.rel (%p351) target = $region44
      $region43: #{convblock_forward.7} parent=35 // pred_region
        _
      $region44: #{convblock_forward.7} parent=35 // pred_fallthru
        _
    $region36: #{convblock_forward.7} parent=5 // pred_fallthru
      _
    %p354 = scmp.le.s32.totalorder 2, %s12
    // Predicated region
    $region45: #{convblock_forward.7} parent=5 // pred_check
      %p355 = pneg %p354
    $region46: #{convblock_forward.7} parent=5 // pred_check_branch
      %357 = sbr.rel (%p355) target = $region48
    $region47: #{convblock_forward.7} parent=5 // pred_region
      %s358 = ssub.s32 %s12, 2
      // Predicated region
      $region49: #{convblock_forward.7} parent=47 // pred_check
        %p359 = pneg %p146
      $region50: #{convblock_forward.7} parent=47 // pred_check_branch
        %361 = sbr.rel (%p359) target = $region52
      $region51: #{convblock_forward.7} parent=47 // pred_region
        %p362 = scmp.lt.s32.totalorder %s23, 1
        %s363 = scalar_select %p362, %s23, 1
        %p364 = scmp.lt.s32.totalorder %s24, 0
        %s365 = scalar_select %p364, %s24, 0
        %s366 = sadd.s32 %s365, %s363
        %s367 = smul.addr %s366, 4
        %s368 = scalar_lea.vmem %s4, %s367
      $region52: #{convblock_forward.7} parent=47 // pred_fallthru
        _
      // Predicated region
      $region53: #{convblock_forward.7} parent=47 // pred_check
        %p369 = pneg %p174
      $region54: #{convblock_forward.7} parent=47 // pred_check_branch
        %371 = sbr.rel (%p369) target = $region56
      $region55: #{convblock_forward.7} parent=47 // pred_region
        %p372 = scmp.lt.s32.totalorder %s23, 1
        %s373 = scalar_select %p372, %s23, 1
        %p374 = scmp.lt.s32.totalorder %s24, 0
        %s375 = scalar_select %p374, %s24, 0
        %s376 = sadd.s32 %s375, %s373
        %s377 = smul.addr %s376, 4
        %s378 = scalar_lea.vmem %s5, %s377
      $region56: #{convblock_forward.7} parent=47 // pred_fallthru
        _
    $region48: #{convblock_forward.7} parent=5 // pred_fallthru
      _
  $region6: #{convblock_forward.7} parent=0 // loop_footer
    %s16 = sadd.s32 1, %s12
  $region7: #{convblock_forward.7} parent=0 // loop_footer_branch
    %11 = sbr.rel target = $region3
  $region8: #{convblock_forward.7} parent=0 // loop_exit
    _

// kernel: convblock_forward.11
$region0: #{convblock_forward.11}
  #allocation0 [shape = 'u32[]', space=smem, size = 0x4, offset = 0x4, fixed_abs, tag = 'smem constant byte address 0x4 - core index']
  #allocation1 [shape = 'u32[144,128]{1,0:T(1,128)}', space=vmem, size = 0x12000, scoped, tag = 'internal scratch']
  %s0 = inlined_call_operand.vmem [shape: f32[2,4,16], index: 0, kind: input, shape index: {}]
  %s1 = inlined_call_operand.vmem [shape: f32[4,1], index: 1, kind: input, shape index: {}]
  %s2 = inlined_call_operand.vmem [shape: f32[4,1], index: 2, kind: input, shape index: {}]
  %s3 = inlined_call_operand.hbm [shape: f32[2,4,16], index: 3, kind: output, shape index: {}]
  %s4 = sld [smem:[#allocation0]]
  $region45: #{convblock_forward.11} parent=0
    _
  %s6 = ssub.s32 1, %s4
  %s7 = scalar_select 0, %s6, %s4
  $region1: #{convblock_forward.11} parent=0
    #allocation2 [shape = 'u8[4096]{0}', space=vmem, size = 0x1000, scoped, tag = 'output window, operand 0']
    #allocation3 [shape = 's32[2]{0}', space=sflag, size = 0x8, scoped, tag = 'scoped memory for convblock_forward.11']
    %8 = vsyncpa [#allocation3], 0
    %s9 = scalar_lea.sflag [#allocation3], 1
    %10 = vsyncpa %s9, 0
    loop: start=0, step=1, limit=4
    $region2: #{convblock_forward.11} parent=1 // loop_pre_header
      _
    $region3: #{convblock_forward.11} parent=1 // loop_header
      %s12 = sphi 0, %s16
      %p13 = scmp.ge.s32.totalorder %s12, 4
      %s19 = sphi 0, %s31
      %s20 = sphi 0, %s27
      %s21 = sphi 0, %s19
      %s22 = sphi 0, %s20
      %s23 = sphi 0, %s21
      %s24 = sphi 0, %s22
      %s36 = sphi 0, %s38
      %s39 = sphi 0, %s36
      %s40 = sphi 0, %s39
      %s56 = sphi 0, %s40
      %s60 = sphi 0, %s60
      %s62 = sphi 0, %s60
      %s63 = sphi 0, %s62
      %s77 = sphi 0, %s63
      %s81 = sphi 0, %s81
      %s83 = sphi 0, %s81
      %s84 = sphi 0, %s83
      %s98 = sphi 0, %s84
      %s106 = sphi 0, %s108
      %s109 = sphi 0, %s106
      %s110 = sphi 0, %s109
      %s126 = sphi 0, %s110
    $region4: #{convblock_forward.11} parent=1 // loop_header_branch
      %15 = sbr.rel (%p13) target = $region8
    $region5: #{convblock_forward.11} parent=1 // loop_body
      %s17 = ssub.s32 %s12, 1
      %s18 = ssub.s32 %s12, 2
      %s25 = sadd.s32 1, %s20
      %p26 = scmp.ge.s32.totalorder %s25, 1
      %s27 = scalar_select %p26, 0, %s25
      %s28 = sadd.s32 1, %s19
      %s29 = scalar_select %p26, %s28, %s19
      %p30 = scmp.ge.s32.totalorder %s29, 2
      %s31 = scalar_select %p30, 0, %s29
      %s32 = ssub.s32 %s19, %s31
      %s33 = ssub.s32 %s20, %s27
      %s34 = sor.u32 %s32, %s33
      %p35 = scmp.eq.s32.totalorder %s34, 0
      %s37 = sadd.s32 %s36, 1
      %s38 = scalar_select %p35, %s36, %s37
      %p41 = pneg %p35
      %p42 = scmp.eq.s32.totalorder %s12, 1
      %p43 = por %p41, %p42
      %p44 = scmp.ne.s32.totalorder %s36, %s39
      %p45 = scmp.eq.s32.totalorder %s12, 0
      %p46 = por %p44, %p45
      %p47 = scmp.ne.s32.totalorder %s36, %s39
      %p48 = scmp.eq.s32.totalorder %s17, 1
      %p49 = por %p47, %p48
      %p50 = scmp.ne.s32.totalorder %s39, %s40
      %p51 = scmp.eq.s32.totalorder %s17, 0
      %p52 = por %p50, %p51
      %p53 = scmp.ne.s32.totalorder %s39, %s40
      %p54 = scmp.eq.s32.totalorder %s18, 1
      %p55 = por %p53, %p54
      %p57 = scmp.ne.s32.totalorder %s40, %s56
      %p58 = scmp.eq.s32.totalorder %s18, 0
      %p59 = por %p57, %p58
      %s61 = sadd.s32 %s60, 1
      %p64 = scmp.eq.s32.totalorder %s12, 1
      %p65 = scmp.ne.s32.totalorder %s60, %s62
      %p66 = scmp.eq.s32.totalorder %s12, 0
      %p67 = por %p65, %p66
      %p68 = scmp.ne.s32.totalorder %s60, %s62
      %p69 = scmp.eq.s32.totalorder %s17, 1
      %p70 = por %p68, %p69
      %p71 = scmp.ne.s32.totalorder %s62, %s63
      %p72 = scmp.eq.s32.totalorder %s17, 0
      %p73 = por %p71, %p72
      %p74 = scmp.ne.s32.totalorder %s62, %s63
      %p75 = scmp.eq.s32.totalorder %s18, 1
      %p76 = por %p74, %p75
      %p78 = scmp.ne.s32.totalorder %s63, %s77
      %p79 = scmp.eq.s32.totalorder %s18, 0
      %p80 = por %p78, %p79
      %s82 = sadd.s32 %s81, 1
      %p85 = scmp.eq.s32.totalorder %s12, 1
      %p86 = scmp.ne.s32.totalorder %s81, %s83
      %p87 = scmp.eq.s32.totalorder %s12, 0
      %p88 = por %p86, %p87
      %p89 = scmp.ne.s32.totalorder %s81, %s83
      %p90 = scmp.eq.s32.totalorder %s17, 1
      %p91 = por %p89, %p90
      %p92 = scmp.ne.s32.totalorder %s83, %s84
      %p93 = scmp.eq.s32.totalorder %s17, 0
      %p94 = por %p92, %p93
      %p95 = scmp.ne.s32.totalorder %s83, %s84
      %p96 = scmp.eq.s32.totalorder %s18, 1
      %p97 = por %p95, %p96
      %p99 = scmp.ne.s32.totalorder %s84, %s98
      %p100 = scmp.eq.s32.totalorder %s18, 0
      %p101 = por %p99, %p100
      %s102 = ssub.s32 %s19, %s31
      %s103 = ssub.s32 %s20, %s27
      %s104 = sor.u32 %s102, %s103
      %p105 = scmp.eq.s32.totalorder %s104, 0
      %s107 = sadd.s32 %s106, 1
      %s108 = scalar_select %p105, %s106, %s107
      %p111 = pneg %p105
      %p112 = scmp.eq.s32.totalorder %s12, 1
      %p113 = por %p111, %p112
      %p114 = scmp.ne.s32.totalorder %s106, %s109
      %p115 = scmp.eq.s32.totalorder %s12, 0
      %p116 = por %p114, %p115
      %p117 = scmp.ne.s32.totalorder %s106, %s109
      %p118 = scmp.eq.s32.totalorder %s17, 1
      %p119 = por %p117, %p118
      %p120 = scmp.ne.s32.totalorder %s109, %s110
      %p121 = scmp.eq.s32.totalorder %s17, 0
      %p122 = por %p120, %p121
      %p123 = scmp.ne.s32.totalorder %s109, %s110
      %p124 = scmp.eq.s32.totalorder %s18, 1
      %p125 = por %p123, %p124
      %p127 = scmp.ne.s32.totalorder %s110, %s126
      %p128 = scmp.eq.s32.totalorder %s18, 0
      %p129 = por %p127, %p128
      %p130 = scmp.le.s32.totalorder 1, %s12
      %p131 = scmp.lt.s32.totalorder %s12, 3
      %p132 = pnand %p130, %p131
      %p133 = pneg %p132
      // Predicated region
      $region9: #{convblock_forward.11} parent=5 // pred_check
        _
      $region10: #{convblock_forward.11} parent=5 // pred_check_branch
        %135 = sbr.rel (%p132) target = $region12
      $region11: #{convblock_forward.11} parent=5 // pred_region
        %s136 = ssub.s32 %s12, 1
        // Predicated region
        $region13: #{convblock_forward.11} parent=11 // pred_check
          %p137 = pneg %p73
        $region14: #{convblock_forward.11} parent=11 // pred_check_branch
          %139 = sbr.rel (%p137) target = $region16
        $region15: #{convblock_forward.11} parent=11 // pred_region
          _
        $region16: #{convblock_forward.11} parent=11 // pred_fallthru
          _
        // Predicated region
        $region17: #{convblock_forward.11} parent=11 // pred_check
          %p140 = pneg %p94
        $region18: #{convblock_forward.11} parent=11 // pred_check_branch
          %142 = sbr.rel (%p140) target = $region20
        $region19: #{convblock_forward.11} parent=11 // pred_region
          _
        $region20: #{convblock_forward.11} parent=11 // pred_fallthru
          _
      $region12: #{convblock_forward.11} parent=5 // pred_fallthru
        _
      %p143 = scmp.lt.s32.totalorder %s12, 2
      // Predicated region
      $region21: #{convblock_forward.11} parent=5 // pred_check
        %p144 = pneg %p143
      $region22: #{convblock_forward.11} parent=5 // pred_check_branch
        %146 = sbr.rel (%p144) target = $region24
      $region23: #{convblock_forward.11} parent=5 // pred_region
        // Predicated region
        $region25: #{convblock_forward.11} parent=23 // pred_check
          %p147 = pneg %p46
        $region26: #{convblock_forward.11} parent=23 // pred_check_branch
          %149 = sbr.rel (%p147) target = $region28
        $region27: #{convblock_forward.11} parent=23 // pred_region
          %p150 = scmp.lt.s32.totalorder %s19, 1
          %s151 = scalar_select %p150, %s19, 1
          %p152 = scmp.lt.s32.totalorder %s20, 0
          %s153 = scalar_select %p152, %s20, 0
          %s154 = sadd.s32 %s153, %s151
          %s155 = smul.addr %s154, 4
          %s156 = scalar_lea.vmem %s0, %s155
        $region28: #{convblock_forward.11} parent=23 // pred_fallthru
          _
      $region24: #{convblock_forward.11} parent=5 // pred_fallthru
        _
      %p157 = scmp.le.s32.totalorder 1, %s12
      %p158 = scmp.lt.s32.totalorder %s12, 3
      %p159 = pnand %p157, %p158
      %p160 = pneg %p159
      // Predicated region
      $region29: #{convblock_forward.11} parent=5 // pred_check
        _
      $region30: #{convblock_forward.11} parent=5 // pred_check_branch
        %162 = sbr.rel (%p159) target = $region32
      $region31: #{convblock_forward.11} parent=5 // pred_region
        %s163 = ssub.s32 %s12, 1
        %p164 = scmp.lt.s32.totalorder %s21, 1
        %s165 = scalar_select %p164, %s21, 1
        %p166 = scmp.lt.s32.totalorder %s22, 0
        %s167 = scalar_select %p166, %s22, 0
        %s168 = sadd.s32 %s167, %s165
        %s169 = smul.addr %s168, 4
        %s170 = scalar_lea.vmem %s0, %s169
        %p171 = pneg %p52
        %p172 = pneg %p49
        %p173 = pneg %p73
        %p174 = pneg %p70
        %p175 = pneg %p94
        %p176 = pneg %p91
        %p177 = pneg %p122
        %p178 = pneg %p119
        %s179 = sand.u32 %s109, 1
        %s180 = scalar_lea.sflag [#allocation3], %s179
        %s181 = sand.u32 %s109, 1
        %s182 = smul.addr %s181, 4
        %s183 = scalar_lea.vmem [#allocation2], %s182
        %p184 = scmp.lt.s32.totalorder %s21, 1
        %s185 = scalar_select %p184, %s21, 1
        %p186 = scmp.lt.s32.totalorder %s22, 0
        %s187 = scalar_select %p186, %s22, 0
        %s188 = sadd.s32 %s187, %s185
        %s189 = smul.addr %s188, 4
        %s190 = scalar_lea.vmem %s0, %s189
        %v191 = vld [vmem:[%s190] sm:$0xf]
        %v192 = vld [vmem:[%s1] sm:$0xf]
        %194 = vset.pattern.permute.xlu0 0
        %195 = vperm.xlu0 %194, %v192
        %v196 = vpop.permute.xlu0 %195
        %v198 = vmul.f32 %v191, %v196
        %v199 = vld [vmem:[%s2] sm:$0xf]
        %201 = vset.pattern.permute.xlu0 0
        %202 = vperm.xlu0 %201, %v199
        %v203 = vpop.permute.xlu0 %202
        %v205 = vadd.f32 %v198, %v203
        %v206 = vsub.f32 0.0, %v205
        %v207 = vmul.f32 %v206, 1.442695
        %v208 = vpow.pop %v207
        %v209 = vadd.f32 %v208, 1.0
        %v210 = vrcp.pop %v209
        %v211 = vmul.f32 1.0, %v210
        %v212 = vmul.f32 %v205, %v211
        %vm213 = vcmask 125952
        %214 = vst.msk [vmem:[%s183] sm:$0xf] %vm213, %v212
        %s215 = sand.u32 %s109, 1
        %s216 = scalar_lea.sflag [#allocation3], %s215
        %s217 = sand.u32 %s109, 1
        %s218 = smul.addr %s217, 4
        %s219 = scalar_lea.vmem [#allocation2], %s218
        // Predicated region
        $region33: #{convblock_forward.11} parent=31 // pred_check
          %p220 = pneg %p119
        $region34: #{convblock_forward.11} parent=31 // pred_check_branch
          %222 = sbr.rel (%p220) target = $region36
        $region35: #{convblock_forward.11} parent=31 // pred_region
          %s224 = ssub.s32 64, 64
          %225 = vsyncadd %s216, %s224
          %s226 = sadd.s32 %s22, %s21
          %s227 = smul.addr %s226, 64
          %s228 = scalar_lea.hbm %s3, %s227
          %s230 = sshll.u32 %s219, 4
          %s231 = int_to_ptr.vmem [resolvable:$true] %s230
          %233 = dma.vmem_to_hbm [thread:$0]  %s231, 64, %s228, %s216
        $region36: #{convblock_forward.11} parent=31 // pred_fallthru
          _
      $region32: #{convblock_forward.11} parent=5 // pred_fallthru
        _
      %p234 = scmp.le.s32.totalorder 2, %s12
      // Predicated region
      $region37: #{convblock_forward.11} parent=5 // pred_check
        %p235 = pneg %p234
      $region38: #{convblock_forward.11} parent=5 // pred_check_branch
        %237 = sbr.rel (%p235) target = $region40
      $region39: #{convblock_forward.11} parent=5 // pred_region
        %s238 = ssub.s32 %s12, 2
        // Predicated region
        $region41: #{convblock_forward.11} parent=39 // pred_check
          %p239 = pneg %p125
        $region42: #{convblock_forward.11} parent=39 // pred_check_branch
          %241 = sbr.rel (%p239) target = $region44
        $region43: #{convblock_forward.11} parent=39 // pred_region
          %s242 = sand.u32 %s110, 1
          %s243 = scalar_lea.sflag [#allocation3], %s242
          %s244 = sand.u32 %s110, 1
          %s245 = smul.addr %s244, 4
          %s246 = scalar_lea.vmem [#allocation2], %s245
          %247 = dma.done %s243, 64
        $region44: #{convblock_forward.11} parent=39 // pred_fallthru
          _
      $region40: #{convblock_forward.11} parent=5 // pred_fallthru
        _
    $region6: #{convblock_forward.11} parent=1 // loop_footer
      %s16 = sadd.s32 1, %s12
    $region7: #{convblock_forward.11} parent=1 // loop_footer_branch
      %11 = sbr.rel target = $region3
    $region8: #{convblock_forward.11} parent=1 // loop_exit
      _
    %248 = vsyncpa [#allocation3], 1
    %s249 = scalar_lea.sflag [#allocation3], 1
    %250 = vsyncpa %s249, 1

</llo_original>
